<compile_context>
chip_gen: v6e
topology: v6e:2x2x1
jax: 0.10.0
libtpu: 0.0.40
codegen_flags: <defaults>
</compile_context>

<pallas_src>
import functools

import numpy as np
import jax
import jax.numpy as jnp
from jax import lax
from jax.experimental import pallas as pl
from jax.experimental.pallas import tpu as pltpu

_VMEM = pl.BlockSpec(memory_space=pltpu.MemorySpace.VMEM)
_LANE = 128
_NEG_INF = -9e15            # matches the torch reference's zero_vec constant


def _elu(x):
    # TODO(synk): expm1 would be marginally more accurate for tiny |x|;
    # exp(x) - 1 matches the tolerance and is guaranteed to lower on Mosaic.
    return jnp.where(x > 0, x, jnp.exp(x) - 1.0)


def _round_up(n, m):
    return ((n + m - 1) // m) * m


# ------------------------------ fused kernel --------------------------------


def _gat_fused_kernel(x_ref, bias_ref, w_heads_ref, a1h_ref, a2h_ref,
                      w_out_ref, a1o_ref, a2o_ref, q_ref, o_ref,
                      *, alpha, nheads, hb, nout, bn_eps, act_slope):
    """Entire GAT.forward (eval mode), whole (lane-padded) graph on-chip.

    x_ref       : (Np, Fin)         node features, rows >= N zero-padded
    bias_ref    : (Np, Np)          additive adjacency mask (0 edge / -9e15 non-edge)
    w_heads_ref : (Fin, nheads*hb)  per-head W, each head lane-padded to hb
    a1h_ref     : (nheads, hb)      a[:nhid].T per head (zero lane padding)
    a2h_ref     : (nheads, hb)      a[nhid:].T per head
    w_out_ref   : (nheads*hb, nout) output-layer W (rows lane-padded per head)
    a1o_ref     : (1, nout)         output-layer a[:nout].T
    a2o_ref     : (1, nout)         output-layer a[nout:].T
    q_ref       : (Mp, Np)          Q, zero-padded, bf16
    o_ref       : (nout, Mp)        (Q @ y)^T  -- lane-dense single HBM store
    """
    lrelu_alpha = jnp.float32(alpha)
    bias = bias_ref[...]            # loaded once, reused by all three attention passes

    def attn_weights(Wh, a1, a2):
        # e[i,j] = LeakyReLU_alpha( Wh[i]·a1 + Wh[j]·a2 ); masked row softmax.
        # Score path stays f32: rounding here is amplified by exp().
        f1 = jnp.sum(Wh * a1, axis=-1, keepdims=True)                 # (Np,1) VPU+XLU
        f2 = lax.dot_general(a2, Wh, (((1,), (1,)), ((), ())),
                             preferred_element_type=jnp.float32)      # (1,Np) lane-dense
        e = f1 + f2                                                   # (Np,Np)
        e = jnp.maximum(e, lrelu_alpha * e)      # LeakyReLU (alpha<1) as mul+max
        att = e + bias                           # additive mask: no cmp/select
        m = jnp.max(att, axis=1, keepdims=True)
        p = jnp.exp(att - m)
        s = jnp.sum(p, axis=1, keepdims=True)
        # attention dropout: eval -> identity
        return p * pl.reciprocal(s, approx=True)          # EUP vrcp (idle slot)

    Np = x_ref.shape[0]

    # All heads' projections in one MXU pass (f32: feeds exponentiated scores).
    Wh_all = jnp.dot(x_ref[...], w_heads_ref[...],
                     preferred_element_type=jnp.float32)   # (Np, nheads*hb)

    # Heads (concat=True) fused with the xc @ W_out contraction:
    #   concat_h(ELU(head_h)) @ W_out == sum_h ELU(head_h) @ W_out[h-block]
    # so the concatenated xc is never materialized. Per-head slices land on
    # 128-lane tile boundaries (hb is a multiple of 128) -> no lane shuffles;
    # zero-padded lanes stay zero through attention and ELU.
    Wh_out = jnp.zeros((Np, nout), jnp.float32)
    for h in range(nheads):                                # static unroll (nheads small)
        WhP = Wh_all[:, h * hb:(h + 1) * hb]               # (Np, hb), tile-aligned
        attn = attn_weights(WhP, a1h_ref[h:h + 1, :], a2h_ref[h:h + 1, :])
        hp = _elu(jnp.dot(attn, WhP, preferred_element_type=jnp.float32))
        Wh_out = Wh_out + jnp.dot(hp, w_out_ref[h * hb:(h + 1) * hb, :],
                                  preferred_element_type=jnp.float32)

    # Output attention layer (concat=False -> no ELU inside the layer).
    attn_o = attn_weights(Wh_out, a1o_ref[...], a2o_ref[...])
    # Everything below is downstream of the last softmax -> bf16 MXU operands
    # with f32 accumulation are numerically safe (linear error only).
    out = jnp.dot(attn_o.astype(jnp.bfloat16), Wh_out.astype(jnp.bfloat16),
                  preferred_element_type=jnp.float32)      # (Np, nout)

    # F.elu -> BatchNorm1d eval (default stats) -> LeakyReLU(0.01) -> Q @ x
    y = _elu(out)
    y = y * jnp.float32(1.0 / np.sqrt(1.0 + bn_eps))
    y = jnp.maximum(y, jnp.float32(act_slope) * y)
    # Lane-dense store: emit (Q @ y)^T by contracting over the node axis.
    o_ref[...] = lax.dot_general(y.astype(jnp.bfloat16), q_ref[...],
                                 (((0,), (1,)), ((), ())),
                                 preferred_element_type=jnp.float32)


# ------------------------------- JAX wrapper ---------------------------------


def gat_forward(x, adj, params, *, alpha):
    h, w, b = x.shape
    N = h * w
    xf = x.reshape(N, b).astype(jnp.float32)            # x.reshape([h*w, -1])

    heads = params["heads"]
    nheads = len(heads)
    nhid = heads[0][0].shape[1]
    nout = params["W_out"].shape[1]
    Q = params["Q"]
    M, Fin = Q.shape[0], xf.shape[1]

    Np = _round_up(N, _LANE)       # lane-pad the node axis
    Mp = _round_up(M, _LANE)       # lane-pad Q's row axis (output lane dim)
    hb = _round_up(nhid, _LANE)    # per-head lane-padded block width

    # ---- wrapper-side packing / padding (tiny XLA ops; fuse under jit) ----
    x_p = jnp.pad(xf, ((0, Np - N), (0, 0)))                            # (Np, Fin)
    # Adjacency mask as an additive bias, computed ONCE outside the kernel.
    adj_p = jnp.pad(adj.astype(jnp.float32), ((0, Np - N), (0, Np - N)))
    adj_bias = jnp.where(adj_p > 0, 0.0, _NEG_INF).astype(jnp.float32)  # (Np, Np)
    if Np > N:
        # Pad nodes: self-loop only. Their rows never reach real outputs
        # (real rows mask them out, Q's pad columns are zero).
        pad_ids = jnp.arange(N, Np)
        adj_bias = adj_bias.at[pad_ids, pad_ids].set(0.0)
    q_p = jnp.pad(Q, ((0, Mp - M), (0, Np - N))).astype(jnp.bfloat16)   # (Mp, Np)

    # Per-head parameters packed into their own 128-lane blocks (zero fill).
    W_heads = jnp.zeros((Fin, nheads * hb), jnp.float32)
    a1_heads = jnp.zeros((nheads, hb), jnp.float32)
    a2_heads = jnp.zeros((nheads, hb), jnp.float32)
    W_out_p = jnp.zeros((nheads * hb, nout), jnp.float32)
    for i, (Wi, ai) in enumerate(heads):
        W_heads = W_heads.at[:, i * hb:i * hb + nhid].set(Wi)
        a1_heads = a1_heads.at[i, :nhid].set(ai[:nhid, 0])
        a2_heads = a2_heads.at[i, :nhid].set(ai[nhid:, 0])
        W_out_p = W_out_p.at[i * hb:i * hb + nhid, :].set(
            params["W_out"][i * nhid:(i + 1) * nhid, :])
    a1_out = params["a_out"][:nout].T                                   # (1, nout)
    a2_out = params["a_out"][nout:].T                                   # (1, nout)

    # NOTE: superpixels_flatten (norm_col_Q.T @ x) is unused in the reference
    # forward's returned value -> not computed.

    kern = functools.partial(
        _gat_fused_kernel, alpha=float(alpha), nheads=nheads, hb=hb,
        nout=nout, bn_eps=1e-5, act_slope=0.01)
    out_t = pl.pallas_call(
        kern,
        out_shape=jax.ShapeDtypeStruct((nout, Mp), jnp.float32),
        in_specs=[_VMEM] * 9,
        out_specs=_VMEM,
        # Explicit VMEM budget (v5e's scoped default is only 16 MiB).
        compiler_params=pltpu.CompilerParams(vmem_limit_bytes=32 * 1024 * 1024),
    )(x_p, adj_bias, W_heads, a1_heads, a2_heads, W_out_p, a1_out, a2_out, q_p)
    return out_t.T[:M]     # (M, nout); tiny transpose + slice in XLA


# ----------------------------- pure-JAX reference ----------------------------


def _ref_gat_layer(hm, W, a, adj, alpha, concat):
    Wh = hm @ W
    Fout = W.shape[1]
    f1 = Wh @ a[:Fout]
    f2 = Wh @ a[Fout:]
    e = f1 + f2.T
    e = jnp.where(e > 0, e, alpha * e)
    att = jnp.where(adj > 0, e, -9e15)
    att = jax.nn.softmax(att, axis=1)
    hp = att @ Wh
    if concat:
        hp = jnp.where(hp > 0, hp, jnp.exp(hp) - 1.0)
    return hp


def reference_forward(x, adj, params, *, alpha):
    h, w, b = x.shape
    xf = x.reshape(h * w, b)
    heads = [_ref_gat_layer(xf, Wi, ai, adj, alpha, True) for (Wi, ai) in params["heads"]]
    xc = jnp.concatenate(heads, axis=1)
    out = _ref_gat_layer(xc, params["W_out"], params["a_out"], adj, alpha, False)
    y = jnp.where(out > 0, out, jnp.exp(out) - 1.0)
    y = y / jnp.sqrt(1.0 + 1e-5)
    y = jnp.where(y > 0, y, 0.01 * y)
    return params["Q"] @ y


# ---------------------------------- main -------------------------------------


def _xavier_uniform(key, shape, gain):
    fan_in, fan_out = shape[0], shape[1]
    bound = gain * np.sqrt(6.0 / (fan_in + fan_out))
    return jax.random.uniform(key, shape, jnp.float32, -bound, bound)


if __name__ == "__main__":
    nfeat, nhid, nout, nheads = 32, 16, 16, 2
    alpha = 0.2
    H, Wd = 8, 8
    N = H * Wd

    key = jax.random.PRNGKey(0)
    keys = jax.random.split(key, 16)

    x = jax.random.normal(keys[0], (H, Wd, nfeat), jnp.float32)
    adj = (jax.random.uniform(keys[1], (N, N)) > 0.5).astype(jnp.float32)
    adj = jnp.maximum(adj, jnp.eye(N, dtype=jnp.float32))   # self-loops keep softmax rows non-empty
    Q = jax.random.uniform(keys[2], (N, N), jnp.float32, 0.1, 1.0)

    gain = 1.414
    heads = []
    for i in range(nheads):
        Wi = _xavier_uniform(keys[3 + 2 * i], (nfeat, nhid), gain)
        ai = _xavier_uniform(keys[4 + 2 * i], (2 * nhid, 1), gain)
        heads.append((Wi, ai))
    W_out = _xavier_uniform(keys[10], (nheads * nhid, nout), gain)
    a_out = _xavier_uniform(keys[11], (2 * nout, 1), gain)
    params = {"heads": heads, "W_out": W_out, "a_out": a_out, "Q": Q}

    fwd = jax.jit(functools.partial(gat_forward, alpha=alpha))
    y = jax.block_until_ready(fwd(x, adj, params))

    y_ref = reference_forward(x, adj, params, alpha=alpha)
    np.testing.assert_allclose(np.asarray(y), np.asarray(y_ref), rtol=2e-2, atol=2e-2)

    print("KERNEL_OK")
</pallas_src>

<mosaic_0001>
module attributes {stable_mosaic.version = 11 : i64} {
  func.func @_gat_fused_kernel(%arg0: memref<128x32xf32, #tpu.memory_space<vmem>>, %arg1: memref<128x128xf32, #tpu.memory_space<vmem>>, %arg2: memref<32x256xf32, #tpu.memory_space<vmem>>, %arg3: memref<2x128xf32, #tpu.memory_space<vmem>>, %arg4: memref<2x128xf32, #tpu.memory_space<vmem>>, %arg5: memref<256x16xf32, #tpu.memory_space<vmem>>, %arg6: memref<1x16xf32, #tpu.memory_space<vmem>>, %arg7: memref<1x16xf32, #tpu.memory_space<vmem>>, %arg8: memref<128x128xbf16, #tpu.memory_space<vmem>>, %arg9: memref<16x128xf32, #tpu.memory_space<vmem>>) attributes {dimension_semantics = [], scalar_prefetch = 0 : i64, scratch_operands = 0 : i64, tpu.core_type = #tpu.core_type<tc>} {
    %c0 = arith.constant 0 : index
    %c0_0 = arith.constant 0 : index
    %0 = vector.load %arg1[%c0, %c0_0] : memref<128x128xf32, #tpu.memory_space<vmem>>, vector<128x128xf32>
    %c0_1 = arith.constant 0 : index
    %c0_2 = arith.constant 0 : index
    %1 = vector.load %arg0[%c0_1, %c0_2] : memref<128x32xf32, #tpu.memory_space<vmem>>, vector<128x32xf32>
    %c0_3 = arith.constant 0 : index
    %c0_4 = arith.constant 0 : index
    %2 = vector.load %arg2[%c0_3, %c0_4] : memref<32x256xf32, #tpu.memory_space<vmem>>, vector<32x256xf32>
    %cst = arith.constant dense<0.000000e+00> : vector<128x256xf32>
    %3 = tpu.matmul %1, %2, %cst {dimension_numbers = #tpu.dot_dimension_numbers<[1], [0], [0], [1], [0, 0, 1, 1], [], []>} : vector<128x32xf32>, vector<32x256xf32>, vector<128x256xf32> -> vector<128x256xf32>
    %cst_5 = arith.constant 0.000000e+00 : f32
    %4 = vector.broadcast %cst_5 : f32 to vector<128x16xf32>
    %5 = vector.extract_strided_slice %3 {offsets = [0, 0], sizes = [128, 128], strides = [1, 1]} : vector<128x256xf32> to vector<128x128xf32>
    %c0_6 = arith.constant 0 : index
    %c0_7 = arith.constant 0 : index
    %6 = vector.load %arg3[%c0_6, %c0_7] : memref<2x128xf32, #tpu.memory_space<vmem>>, vector<1x128xf32>
    %c0_8 = arith.constant 0 : index
    %c0_9 = arith.constant 0 : index
    %7 = vector.load %arg4[%c0_8, %c0_9] : memref<2x128xf32, #tpu.memory_space<vmem>>, vector<1x128xf32>
    %8 = vector.broadcast %6 : vector<1x128xf32> to vector<128x128xf32>
    %9 = arith.mulf %5, %8 : vector<128x128xf32>
    %cst_10 = arith.constant dense<0.000000e+00> : vector<128xf32>
    %10 = vector.multi_reduction <add>, %9, %cst_10 [1] : vector<128x128xf32> to vector<128xf32>
    %11 = vector.shape_cast %10 : vector<128xf32> to vector<128x1xf32>
    %cst_11 = arith.constant dense<0.000000e+00> : vector<1x128xf32>
    %12 = tpu.matmul %7, %5, %cst_11 {dimension_numbers = #tpu.dot_dimension_numbers<[1], [1], [0], [0], [0, 0, 1, 0], [], []>} : vector<1x128xf32>, vector<128x128xf32>, vector<1x128xf32> -> vector<1x128xf32>
    %13 = vector.broadcast %11 : vector<128x1xf32> to vector<128x128xf32>
    %14 = vector.broadcast %12 : vector<1x128xf32> to vector<128x128xf32>
    %15 = arith.addf %13, %14 : vector<128x128xf32>
    %cst_12 = arith.constant 2.000000e-01 : f32
    %16 = vector.broadcast %cst_12 : f32 to vector<128x128xf32>
    %17 = arith.mulf %16, %15 : vector<128x128xf32>
    %18 = arith.maximumf %15, %17 : vector<128x128xf32>
    %19 = arith.addf %18, %0 : vector<128x128xf32>
    %cst_13 = arith.constant dense<0xFF800000> : vector<128xf32>
    %20 = vector.multi_reduction <maximumf>, %19, %cst_13 [1] : vector<128x128xf32> to vector<128xf32>
    %21 = vector.shape_cast %20 : vector<128xf32> to vector<128x1xf32>
    %22 = vector.broadcast %21 : vector<128x1xf32> to vector<128x128xf32>
    %23 = arith.subf %19, %22 : vector<128x128xf32>
    %24 = math.exp %23 : vector<128x128xf32>
    %cst_14 = arith.constant dense<0.000000e+00> : vector<128xf32>
    %25 = vector.multi_reduction <add>, %24, %cst_14 [1] : vector<128x128xf32> to vector<128xf32>
    %26 = vector.shape_cast %25 : vector<128xf32> to vector<128x1xf32>
    %27 = tpu.reciprocal %26 {approx = true} : vector<128x1xf32> -> vector<128x1xf32>
    %28 = vector.broadcast %27 : vector<128x1xf32> to vector<128x128xf32>
    %29 = arith.mulf %24, %28 : vector<128x128xf32>
    %cst_15 = arith.constant dense<0.000000e+00> : vector<128x128xf32>
    %30 = tpu.matmul %29, %5, %cst_15 {dimension_numbers = #tpu.dot_dimension_numbers<[1], [0], [0], [1], [0, 0, 1, 1], [], []>} : vector<128x128xf32>, vector<128x128xf32>, vector<128x128xf32> -> vector<128x128xf32>
    %cst_16 = arith.constant 0.000000e+00 : f32
    %31 = vector.broadcast %cst_16 : f32 to vector<128x128xf32>
    %32 = arith.cmpf ogt, %30, %31 : vector<128x128xf32>
    %33 = math.exp %30 : vector<128x128xf32>
    %cst_17 = arith.constant 1.000000e+00 : f32
    %34 = vector.broadcast %cst_17 : f32 to vector<128x128xf32>
    %35 = arith.subf %33, %34 : vector<128x128xf32>
    %36 = arith.select %32, %30, %35 : vector<128x128xi1>, vector<128x128xf32>
    %c0_18 = arith.constant 0 : index
    %c0_19 = arith.constant 0 : index
    %37 = vector.load %arg5[%c0_18, %c0_19] : memref<256x16xf32, #tpu.memory_space<vmem>>, vector<128x16xf32>
    %cst_20 = arith.constant dense<0.000000e+00> : vector<128x16xf32>
    %38 = tpu.matmul %36, %37, %cst_20 {dimension_numbers = #tpu.dot_dimension_numbers<[1], [0], [0], [1], [0, 0, 1, 1], [], []>} : vector<128x128xf32>, vector<128x16xf32>, vector<128x16xf32> -> vector<128x16xf32>
    %39 = arith.addf %4, %38 : vector<128x16xf32>
    %40 = vector.extract_strided_slice %3 {offsets = [0, 128], sizes = [128, 128], strides = [1, 1]} : vector<128x256xf32> to vector<128x128xf32>
    %c1 = arith.constant 1 : index
    %c0_21 = arith.constant 0 : index
    %41 = vector.load %arg3[%c1, %c0_21] : memref<2x128xf32, #tpu.memory_space<vmem>>, vector<1x128xf32>
    %c1_22 = arith.constant 1 : index
    %c0_23 = arith.constant 0 : index
    %42 = vector.load %arg4[%c1_22, %c0_23] : memref<2x128xf32, #tpu.memory_space<vmem>>, vector<1x128xf32>
    %43 = vector.broadcast %41 : vector<1x128xf32> to vector<128x128xf32>
    %44 = arith.mulf %40, %43 : vector<128x128xf32>
    %cst_24 = arith.constant dense<0.000000e+00> : vector<128xf32>
    %45 = vector.multi_reduction <add>, %44, %cst_24 [1] : vector<128x128xf32> to vector<128xf32>
    %46 = vector.shape_cast %45 : vector<128xf32> to vector<128x1xf32>
    %cst_25 = arith.constant dense<0.000000e+00> : vector<1x128xf32>
    %47 = tpu.matmul %42, %40, %cst_25 {dimension_numbers = #tpu.dot_dimension_numbers<[1], [1], [0], [0], [0, 0, 1, 0], [], []>} : vector<1x128xf32>, vector<128x128xf32>, vector<1x128xf32> -> vector<1x128xf32>
    %48 = vector.broadcast %46 : vector<128x1xf32> to vector<128x128xf32>
    %49 = vector.broadcast %47 : vector<1x128xf32> to vector<128x128xf32>
    %50 = arith.addf %48, %49 : vector<128x128xf32>
    %cst_26 = arith.constant 2.000000e-01 : f32
    %51 = vector.broadcast %cst_26 : f32 to vector<128x128xf32>
    %52 = arith.mulf %51, %50 : vector<128x128xf32>
    %53 = arith.maximumf %50, %52 : vector<128x128xf32>
    %54 = arith.addf %53, %0 : vector<128x128xf32>
    %cst_27 = arith.constant dense<0xFF800000> : vector<128xf32>
    %55 = vector.multi_reduction <maximumf>, %54, %cst_27 [1] : vector<128x128xf32> to vector<128xf32>
    %56 = vector.shape_cast %55 : vector<128xf32> to vector<128x1xf32>
    %57 = vector.broadcast %56 : vector<128x1xf32> to vector<128x128xf32>
    %58 = arith.subf %54, %57 : vector<128x128xf32>
    %59 = math.exp %58 : vector<128x128xf32>
    %cst_28 = arith.constant dense<0.000000e+00> : vector<128xf32>
    %60 = vector.multi_reduction <add>, %59, %cst_28 [1] : vector<128x128xf32> to vector<128xf32>
    %61 = vector.shape_cast %60 : vector<128xf32> to vector<128x1xf32>
    %62 = tpu.reciprocal %61 {approx = true} : vector<128x1xf32> -> vector<128x1xf32>
    %63 = vector.broadcast %62 : vector<128x1xf32> to vector<128x128xf32>
    %64 = arith.mulf %59, %63 : vector<128x128xf32>
    %cst_29 = arith.constant dense<0.000000e+00> : vector<128x128xf32>
    %65 = tpu.matmul %64, %40, %cst_29 {dimension_numbers = #tpu.dot_dimension_numbers<[1], [0], [0], [1], [0, 0, 1, 1], [], []>} : vector<128x128xf32>, vector<128x128xf32>, vector<128x128xf32> -> vector<128x128xf32>
    %cst_30 = arith.constant 0.000000e+00 : f32
    %66 = vector.broadcast %cst_30 : f32 to vector<128x128xf32>
    %67 = arith.cmpf ogt, %65, %66 : vector<128x128xf32>
    %68 = math.exp %65 : vector<128x128xf32>
    %cst_31 = arith.constant 1.000000e+00 : f32
    %69 = vector.broadcast %cst_31 : f32 to vector<128x128xf32>
    %70 = arith.subf %68, %69 : vector<128x128xf32>
    %71 = arith.select %67, %65, %70 : vector<128x128xi1>, vector<128x128xf32>
    %c128 = arith.constant 128 : index
    %c0_32 = arith.constant 0 : index
    %72 = vector.load %arg5[%c128, %c0_32] : memref<256x16xf32, #tpu.memory_space<vmem>>, vector<128x16xf32>
    %cst_33 = arith.constant dense<0.000000e+00> : vector<128x16xf32>
    %73 = tpu.matmul %71, %72, %cst_33 {dimension_numbers = #tpu.dot_dimension_numbers<[1], [0], [0], [1], [0, 0, 1, 1], [], []>} : vector<128x128xf32>, vector<128x16xf32>, vector<128x16xf32> -> vector<128x16xf32>
    %74 = arith.addf %39, %73 : vector<128x16xf32>
    %c0_34 = arith.constant 0 : index
    %c0_35 = arith.constant 0 : index
    %75 = vector.load %arg6[%c0_34, %c0_35] : memref<1x16xf32, #tpu.memory_space<vmem>>, vector<1x16xf32>
    %c0_36 = arith.constant 0 : index
    %c0_37 = arith.constant 0 : index
    %76 = vector.load %arg7[%c0_36, %c0_37] : memref<1x16xf32, #tpu.memory_space<vmem>>, vector<1x16xf32>
    %77 = vector.broadcast %75 : vector<1x16xf32> to vector<128x16xf32>
    %78 = arith.mulf %74, %77 : vector<128x16xf32>
    %cst_38 = arith.constant dense<0.000000e+00> : vector<128xf32>
    %79 = vector.multi_reduction <add>, %78, %cst_38 [1] : vector<128x16xf32> to vector<128xf32>
    %80 = vector.shape_cast %79 : vector<128xf32> to vector<128x1xf32>
    %cst_39 = arith.constant dense<0.000000e+00> : vector<1x128xf32>
    %81 = tpu.matmul %76, %74, %cst_39 {dimension_numbers = #tpu.dot_dimension_numbers<[1], [1], [0], [0], [0, 0, 1, 0], [], []>} : vector<1x16xf32>, vector<128x16xf32>, vector<1x128xf32> -> vector<1x128xf32>
    %82 = vector.broadcast %80 : vector<128x1xf32> to vector<128x128xf32>
    %83 = vector.broadcast %81 : vector<1x128xf32> to vector<128x128xf32>
    %84 = arith.addf %82, %83 : vector<128x128xf32>
    %cst_40 = arith.constant 2.000000e-01 : f32
    %85 = vector.broadcast %cst_40 : f32 to vector<128x128xf32>
    %86 = arith.mulf %85, %84 : vector<128x128xf32>
    %87 = arith.maximumf %84, %86 : vector<128x128xf32>
    %88 = arith.addf %87, %0 : vector<128x128xf32>
    %cst_41 = arith.constant dense<0xFF800000> : vector<128xf32>
    %89 = vector.multi_reduction <maximumf>, %88, %cst_41 [1] : vector<128x128xf32> to vector<128xf32>
    %90 = vector.shape_cast %89 : vector<128xf32> to vector<128x1xf32>
    %91 = vector.broadcast %90 : vector<128x1xf32> to vector<128x128xf32>
    %92 = arith.subf %88, %91 : vector<128x128xf32>
    %93 = math.exp %92 : vector<128x128xf32>
    %cst_42 = arith.constant dense<0.000000e+00> : vector<128xf32>
    %94 = vector.multi_reduction <add>, %93, %cst_42 [1] : vector<128x128xf32> to vector<128xf32>
    %95 = vector.shape_cast %94 : vector<128xf32> to vector<128x1xf32>
    %96 = tpu.reciprocal %95 {approx = true} : vector<128x1xf32> -> vector<128x1xf32>
    %97 = vector.broadcast %96 : vector<128x1xf32> to vector<128x128xf32>
    %98 = arith.mulf %93, %97 : vector<128x128xf32>
    %99 = arith.truncf %98 : vector<128x128xf32> to vector<128x128xbf16>
    %100 = arith.truncf %74 : vector<128x16xf32> to vector<128x16xbf16>
    %cst_43 = arith.constant dense<0.000000e+00> : vector<128x16xf32>
    %101 = tpu.matmul %99, %100, %cst_43 {dimension_numbers = #tpu.dot_dimension_numbers<[1], [0], [0], [1], [0, 0, 1, 1], [], []>} : vector<128x128xbf16>, vector<128x16xbf16>, vector<128x16xf32> -> vector<128x16xf32>
    %cst_44 = arith.constant 0.000000e+00 : f32
    %102 = vector.broadcast %cst_44 : f32 to vector<128x16xf32>
    %103 = arith.cmpf ogt, %101, %102 : vector<128x16xf32>
    %104 = math.exp %101 : vector<128x16xf32>
    %cst_45 = arith.constant 1.000000e+00 : f32
    %105 = vector.broadcast %cst_45 : f32 to vector<128x16xf32>
    %106 = arith.subf %104, %105 : vector<128x16xf32>
    %107 = arith.select %103, %101, %106 : vector<128x16xi1>, vector<128x16xf32>
    %cst_46 = arith.constant 0.999994993 : f32
    %108 = vector.broadcast %cst_46 : f32 to vector<128x16xf32>
    %109 = arith.mulf %107, %108 : vector<128x16xf32>
    %cst_47 = arith.constant 0.00999999977 : f32
    %110 = vector.broadcast %cst_47 : f32 to vector<128x16xf32>
    %111 = arith.mulf %110, %109 : vector<128x16xf32>
    %112 = arith.maximumf %109, %111 : vector<128x16xf32>
    %113 = arith.truncf %112 : vector<128x16xf32> to vector<128x16xbf16>
    %c0_48 = arith.constant 0 : index
    %c0_49 = arith.constant 0 : index
    %114 = vector.load %arg8[%c0_48, %c0_49] : memref<128x128xbf16, #tpu.memory_space<vmem>>, vector<128x128xbf16>
    %cst_50 = arith.constant dense<0.000000e+00> : vector<16x128xf32>
    %115 = tpu.matmul %113, %114, %cst_50 {dimension_numbers = #tpu.dot_dimension_numbers<[0], [1], [1], [0], [0, 1, 1, 0], [], []>} : vector<128x16xbf16>, vector<128x128xbf16>, vector<16x128xf32> -> vector<16x128xf32>
    %c0_51 = arith.constant 0 : index
    %c0_52 = arith.constant 0 : index
    %116 = vector.load %arg9[%c0_51, %c0_52] : memref<16x128xf32, #tpu.memory_space<vmem>>, vector<16x128xf32>
    tpu.vector_store %arg9[%c0_51, %c0_52], %115 {strides = array<i32>} : memref<16x128xf32, #tpu.memory_space<vmem>>, vector<16x128xf32>,
    return
  }
}

</mosaic_0001>

<llo_original>
// kernel: gat_forward.1
$region0: #{gat_forward.1}
  #allocation0 [shape = 'u32[]', space=smem, size = 0x4, offset = 0x4, fixed_abs, tag = 'smem constant byte address 0x4 - core index']
  #allocation1 [shape = 'u32[144,128]{1,0:T(1,128)}', space=vmem, size = 0x12000, scoped, tag = 'internal scratch']
  %s0 = inlined_call_operand.vmem [shape: f32[128,32], index: 0, kind: input, shape index: {}]
  %s1 = inlined_call_operand.vmem [shape: f32[128,128], index: 1, kind: input, shape index: {}]
  %s2 = inlined_call_operand.vmem [shape: f32[32,256], index: 2, kind: input, shape index: {}]
  %s3 = inlined_call_operand.vmem [shape: f32[2,128], index: 3, kind: input, shape index: {}]
  %s4 = inlined_call_operand.vmem [shape: f32[2,128], index: 4, kind: input, shape index: {}]
  %s5 = inlined_call_operand.vmem [shape: f32[256,16], index: 5, kind: input, shape index: {}]
  %s6 = inlined_call_operand.vmem [shape: f32[1,16], index: 6, kind: input, shape index: {}]
  %s7 = inlined_call_operand.vmem [shape: f32[1,16], index: 7, kind: input, shape index: {}]
  %s8 = inlined_call_operand.vmem [shape: bf16[128,128], index: 8, kind: input, shape index: {}]
  %s9 = inlined_call_operand.hbm [shape: f32[16,128], index: 9, kind: output, shape index: {}]
  %s10 = sld [smem:[#allocation0]]
  $region46: #{gat_forward.1} parent=0
    _
  %s12 = ssub.s32 1, %s10
  %s13 = scalar_select 0, %s12, %s10
  $region1: #{gat_forward.1} parent=0
    #allocation2 [shape = 'u8[8192]{0}', space=vmem, size = 0x2000, scoped, tag = 'output window, operand 0, single buffered']
    #allocation3 [shape = 's32[1]{0}', space=sflag, size = 0x4, scoped, tag = 'scoped memory for gat_forward.1']
    %14 = vsyncpa [#allocation3], 0
    // Predicated region
    $region2: #{gat_forward.1} parent=1 // pred_check
      _
    $region3: #{gat_forward.1} parent=1 // pred_check_branch
      %16 = sbr.rel (0) target = $region5
    $region4: #{gat_forward.1} parent=1 // pred_region
      _
    $region5: #{gat_forward.1} parent=1 // pred_fallthru
      _
    // Predicated region
    $region6: #{gat_forward.1} parent=1 // pred_check
      _
    $region7: #{gat_forward.1} parent=1 // pred_check_branch
      %18 = sbr.rel (0) target = $region9
    $region8: #{gat_forward.1} parent=1 // pred_region
      _
    $region9: #{gat_forward.1} parent=1 // pred_fallthru
      _
    // Predicated region
    $region10: #{gat_forward.1} parent=1 // pred_check
      _
    $region11: #{gat_forward.1} parent=1 // pred_check_branch
      %20 = sbr.rel (0) target = $region13
    $region12: #{gat_forward.1} parent=1 // pred_region
      _
    $region13: #{gat_forward.1} parent=1 // pred_fallthru
      _
    // Predicated region
    $region14: #{gat_forward.1} parent=1 // pred_check
      _
    $region15: #{gat_forward.1} parent=1 // pred_check_branch
      %22 = sbr.rel (0) target = $region17
    $region16: #{gat_forward.1} parent=1 // pred_region
      _
    $region17: #{gat_forward.1} parent=1 // pred_fallthru
      _
    // Predicated region
    $region18: #{gat_forward.1} parent=1 // pred_check
      _
    $region19: #{gat_forward.1} parent=1 // pred_check_branch
      %24 = sbr.rel (0) target = $region21
    $region20: #{gat_forward.1} parent=1 // pred_region
      _
    $region21: #{gat_forward.1} parent=1 // pred_fallthru
      _
    // Predicated region
    $region22: #{gat_forward.1} parent=1 // pred_check
      _
    $region23: #{gat_forward.1} parent=1 // pred_check_branch
      %26 = sbr.rel (0) target = $region25
    $region24: #{gat_forward.1} parent=1 // pred_region
      _
    $region25: #{gat_forward.1} parent=1 // pred_fallthru
      _
    // Predicated region
    $region26: #{gat_forward.1} parent=1 // pred_check
      _
    $region27: #{gat_forward.1} parent=1 // pred_check_branch
      %28 = sbr.rel (0) target = $region29
    $region28: #{gat_forward.1} parent=1 // pred_region
      _
    $region29: #{gat_forward.1} parent=1 // pred_fallthru
      _
    // Predicated region
    $region30: #{gat_forward.1} parent=1 // pred_check
      _
    $region31: #{gat_forward.1} parent=1 // pred_check_branch
      %30 = sbr.rel (0) target = $region33
    $region32: #{gat_forward.1} parent=1 // pred_region
      _
    $region33: #{gat_forward.1} parent=1 // pred_fallthru
      _
    // Predicated region
    $region34: #{gat_forward.1} parent=1 // pred_check
      _
    $region35: #{gat_forward.1} parent=1 // pred_check_branch
      %32 = sbr.rel (0) target = $region37
    $region36: #{gat_forward.1} parent=1 // pred_region
      _
    $region37: #{gat_forward.1} parent=1 // pred_fallthru
      _
    %v34 = vld [vmem:[%s1] sm:$0xff]
    %v35 = vld [vmem:[%s1 + $0x8] sm:$0xff]
    %v36 = vld [vmem:[%s1 + $0x10] sm:$0xff]
    %v37 = vld [vmem:[%s1 + $0x18] sm:$0xff]
    %v38 = vld [vmem:[%s1 + $0x20] sm:$0xff]
    %v39 = vld [vmem:[%s1 + $0x28] sm:$0xff]
    %v40 = vld [vmem:[%s1 + $0x30] sm:$0xff]
    %v41 = vld [vmem:[%s1 + $0x38] sm:$0xff]
    %v42 = vld [vmem:[%s1 + $0x40] sm:$0xff]
    %v43 = vld [vmem:[%s1 + $0x48] sm:$0xff]
    %v44 = vld [vmem:[%s1 + $0x50] sm:$0xff]
    %v45 = vld [vmem:[%s1 + $0x58] sm:$0xff]
    %v46 = vld [vmem:[%s1 + $0x60] sm:$0xff]
    %v47 = vld [vmem:[%s1 + $0x68] sm:$0xff]
    %v48 = vld [vmem:[%s1 + $0x70] sm:$0xff]
    %v49 = vld [vmem:[%s1 + $0x78] sm:$0xff]
    %v50 = vld [vmem:[%s0] sm:$0xff]
    %v51 = vld [vmem:[%s0 + $0x8] sm:$0xff]
    %v52 = vld [vmem:[%s0 + $0x10] sm:$0xff]
    %v53 = vld [vmem:[%s0 + $0x18] sm:$0xff]
    %v54 = vld [vmem:[%s0 + $0x20] sm:$0xff]
    %v55 = vld [vmem:[%s0 + $0x28] sm:$0xff]
    %v56 = vld [vmem:[%s0 + $0x30] sm:$0xff]
    %v57 = vld [vmem:[%s0 + $0x38] sm:$0xff]
    %v58 = vld [vmem:[%s0 + $0x40] sm:$0xff]
    %v59 = vld [vmem:[%s0 + $0x48] sm:$0xff]
    %v60 = vld [vmem:[%s0 + $0x50] sm:$0xff]
    %v61 = vld [vmem:[%s0 + $0x58] sm:$0xff]
    %v62 = vld [vmem:[%s0 + $0x60] sm:$0xff]
    %v63 = vld [vmem:[%s0 + $0x68] sm:$0xff]
    %v64 = vld [vmem:[%s0 + $0x70] sm:$0xff]
    %v65 = vld [vmem:[%s0 + $0x78] sm:$0xff]
    %v66 = vld [vmem:[%s2] sm:$0xff]
    %v67 = vld [vmem:[%s2 + $0x8] sm:$0xff]
    %v68 = vld [vmem:[%s2 + $0x10] sm:$0xff]
    %v69 = vld [vmem:[%s2 + $0x18] sm:$0xff]
    %v70 = vld [vmem:[%s2 + $0x20] sm:$0xff]
    %v71 = vld [vmem:[%s2 + $0x28] sm:$0xff]
    %v72 = vld [vmem:[%s2 + $0x30] sm:$0xff]
    %v73 = vld [vmem:[%s2 + $0x38] sm:$0xff]
    %vm74 = vcmask 261120
    %v76 = vsel %vm74, %v50, 0
    %v79 = vsel %vm74, %v51, 0
    %v82 = vsel %vm74, %v52, 0
    %v85 = vsel %vm74, %v53, 0
    %v88 = vsel %vm74, %v54, 0
    %v91 = vsel %vm74, %v55, 0
    %v94 = vsel %vm74, %v56, 0
    %v97 = vsel %vm74, %v57, 0
    %v100 = vsel %vm74, %v58, 0
    %v103 = vsel %vm74, %v59, 0
    %v106 = vsel %vm74, %v60, 0
    %v109 = vsel %vm74, %v61, 0
    %v112 = vsel %vm74, %v62, 0
    %v115 = vsel %vm74, %v63, 0
    %v118 = vsel %vm74, %v64, 0
    %v121 = vsel %vm74, %v65, 0
    %123 = vmatprep.subr.mxu0 0.0
    %124 = vmatpush1.msra.mxu0 0.0
    %125 = vmatprep.subr.mxu0 0.0
    %126 = vmatpush1.msra.mxu0 0.0
    %127 = vmatprep.subr.mxu0 0.0
    %128 = vmatpush1.msra.mxu0 0.0
    %129 = vmatprep.subr.mxu0 0.0
    %130 = vmatpush1.msra.mxu0 0.0
    %131 = vmatprep.subr.mxu0 0.0
    %132 = vmatpush1.msra.mxu0 0.0
    %133 = vmatprep.subr.mxu0 0.0
    %134 = vmatpush1.msra.mxu0 0.0
    %135 = vmatprep.subr.mxu0 0.0
    %136 = vmatpush1.msra.mxu0 0.0
    %137 = vmatprep.subr.mxu0 0.0
    %138 = vmatpush1.msra.mxu0 0.0
    %139 = vmatprep.subr.mxu0 0.0
    %140 = vmatpush1.msra.mxu0 0.0
    %141 = vmatprep.subr.mxu0 0.0
    %142 = vmatpush1.msra.mxu0 0.0
    %143 = vmatprep.subr.mxu0 0.0
    %144 = vmatpush1.msra.mxu0 0.0
    %145 = vmatprep.subr.mxu0 0.0
    %146 = vmatpush1.msra.mxu0 0.0
    %147 = vmatprep.subr.mxu0 %v73
    %148 = vmatpush1.msra.mxu0 %v72
    %149 = vmatprep.subr.mxu0 %v71
    %150 = vmatpush1.msra.mxu0 %v70
    %151 = vmatprep.subr.mxu0 %v69
    %152 = vmatpush1.msra.mxu0 %v68
    %153 = vmatprep.subr.mxu0 %v67
    %154 = vmatpush1.msra.mxu0 %v66
    %155 = vmatprep.subr.mxu0 0.0
    %156 = vmatpush2.msra.mxu0 0.0
    %157 = vmatprep.subr.mxu0 0.0
    %158 = vmatpush2.msra.mxu0 0.0
    %159 = vmatprep.subr.mxu0 0.0
    %160 = vmatpush2.msra.mxu0 0.0
    %161 = vmatprep.subr.mxu0 0.0
    %162 = vmatpush2.msra.mxu0 0.0
    %163 = vmatprep.subr.mxu0 0.0
    %164 = vmatpush2.msra.mxu0 0.0
    %165 = vmatprep.subr.mxu0 0.0
    %166 = vmatpush2.msra.mxu0 0.0
    %167 = vmatprep.subr.mxu0 0.0
    %168 = vmatpush2.msra.mxu0 0.0
    %169 = vmatprep.subr.mxu0 0.0
    %170 = vmatpush2.msra.mxu0 0.0
    %171 = vmatprep.subr.mxu0 0.0
    %172 = vmatpush2.msra.mxu0 0.0
    %173 = vmatprep.subr.mxu0 0.0
    %174 = vmatpush2.msra.mxu0 0.0
    %175 = vmatprep.subr.mxu0 0.0
    %176 = vmatpush2.msra.mxu0 0.0
    %177 = vmatprep.subr.mxu0 0.0
    %178 = vmatpush2.msra.mxu0 0.0
    %179 = vmatprep.subr.mxu0 0.0
    %180 = vmatpush2.msra.mxu0 0.0
    %181 = vmatprep.subr.mxu0 0.0
    %182 = vmatpush2.msra.mxu0 0.0
    %183 = vmatprep.subr.mxu0 0.0
    %184 = vmatpush2.msra.mxu0 0.0
    %185 = vmatprep.subr.mxu0 0.0
    %186 = vmatpush2.msra.mxu0 0.0
    %187 = vmatprep.mubr.f32.mxu0 0.0
    %188 = vmatmul.mubr.f32.gmra.mxu0 %v76
    %v189 = vpop.f32.mrf.mxu0
    %v190 = vadd.f32 0.0, %v189
    %v191 = vpop.f32.mrf.mxu0
    %v192 = vadd.f32 0.0, %v191
    %193 = vmatprep.mubr.f32.mxu0 0.0
    %194 = vmatmul.mubr.f32.gmra.mxu0 %v79
    %v195 = vpop.f32.mrf.mxu0
    %v196 = vadd.f32 0.0, %v195
    %v197 = vpop.f32.mrf.mxu0
    %v198 = vadd.f32 0.0, %v197
    %199 = vmatprep.mubr.f32.mxu0 0.0
    %200 = vmatmul.mubr.f32.gmra.mxu0 %v82
    %v201 = vpop.f32.mrf.mxu0
    %v202 = vadd.f32 0.0, %v201
    %v203 = vpop.f32.mrf.mxu0
    %v204 = vadd.f32 0.0, %v203
    %205 = vmatprep.mubr.f32.mxu0 0.0
    %206 = vmatmul.mubr.f32.gmra.mxu0 %v85
    %v207 = vpop.f32.mrf.mxu0
    %v208 = vadd.f32 0.0, %v207
    %v209 = vpop.f32.mrf.mxu0
    %v210 = vadd.f32 0.0, %v209
    %211 = vmatprep.mubr.f32.mxu0 0.0
    %212 = vmatmul.mubr.f32.gmra.mxu0 %v88
    %v213 = vpop.f32.mrf.mxu0
    %v214 = vadd.f32 0.0, %v213
    %v215 = vpop.f32.mrf.mxu0
    %v216 = vadd.f32 0.0, %v215
    %217 = vmatprep.mubr.f32.mxu0 0.0
    %218 = vmatmul.mubr.f32.gmra.mxu0 %v91
    %v219 = vpop.f32.mrf.mxu0
    %v220 = vadd.f32 0.0, %v219
    %v221 = vpop.f32.mrf.mxu0
    %v222 = vadd.f32 0.0, %v221
    %223 = vmatprep.mubr.f32.mxu0 0.0
    %224 = vmatmul.mubr.f32.gmra.mxu0 %v94
    %v225 = vpop.f32.mrf.mxu0
    %v226 = vadd.f32 0.0, %v225
    %v227 = vpop.f32.mrf.mxu0
    %v228 = vadd.f32 0.0, %v227
    %229 = vmatprep.mubr.f32.mxu0 0.0
    %230 = vmatmul.mubr.f32.gmra.mxu0 %v97
    %v231 = vpop.f32.mrf.mxu0
    %v232 = vadd.f32 0.0, %v231
    %v233 = vpop.f32.mrf.mxu0
    %v234 = vadd.f32 0.0, %v233
    %235 = vmatprep.mubr.f32.mxu0 0.0
    %236 = vmatmul.mubr.f32.gmra.mxu0 %v100
    %v237 = vpop.f32.mrf.mxu0
    %v238 = vadd.f32 0.0, %v237
    %v239 = vpop.f32.mrf.mxu0
    %v240 = vadd.f32 0.0, %v239
    %241 = vmatprep.mubr.f32.mxu0 0.0
    %242 = vmatmul.mubr.f32.gmra.mxu0 %v103
    %v243 = vpop.f32.mrf.mxu0
    %v244 = vadd.f32 0.0, %v243
    %v245 = vpop.f32.mrf.mxu0
    %v246 = vadd.f32 0.0, %v245
    %247 = vmatprep.mubr.f32.mxu0 0.0
    %248 = vmatmul.mubr.f32.gmra.mxu0 %v106
    %v249 = vpop.f32.mrf.mxu0
    %v250 = vadd.f32 0.0, %v249
    %v251 = vpop.f32.mrf.mxu0
    %v252 = vadd.f32 0.0, %v251
    %253 = vmatprep.mubr.f32.mxu0 0.0
    %254 = vmatmul.mubr.f32.gmra.mxu0 %v109
    %v255 = vpop.f32.mrf.mxu0
    %v256 = vadd.f32 0.0, %v255
    %v257 = vpop.f32.mrf.mxu0
    %v258 = vadd.f32 0.0, %v257
    %259 = vmatprep.mubr.f32.mxu0 0.0
    %260 = vmatmul.mubr.f32.gmra.mxu0 %v112
    %v261 = vpop.f32.mrf.mxu0
    %v262 = vadd.f32 0.0, %v261
    %v263 = vpop.f32.mrf.mxu0
    %v264 = vadd.f32 0.0, %v263
    %265 = vmatprep.mubr.f32.mxu0 0.0
    %266 = vmatmul.mubr.f32.gmra.mxu0 %v115
    %v267 = vpop.f32.mrf.mxu0
    %v268 = vadd.f32 0.0, %v267
    %v269 = vpop.f32.mrf.mxu0
    %v270 = vadd.f32 0.0, %v269
    %271 = vmatprep.mubr.f32.mxu0 0.0
    %272 = vmatmul.mubr.f32.gmra.mxu0 %v118
    %v273 = vpop.f32.mrf.mxu0
    %v274 = vadd.f32 0.0, %v273
    %v275 = vpop.f32.mrf.mxu0
    %v276 = vadd.f32 0.0, %v275
    %277 = vmatprep.mubr.f32.mxu0 0.0
    %278 = vmatmul.mubr.f32.gmra.mxu0 %v121
    %v279 = vpop.f32.mrf.mxu0
    %v280 = vadd.f32 0.0, %v279
    %v281 = vpop.f32.mrf.mxu0
    %v282 = vadd.f32 0.0, %v281
    %283 = vdwg.mxu0
    %v284 = vld [vmem:[%s3] sm:$0x1]
    %v285 = vld [vmem:[%s4] sm:$0x1]
    %v286 = vlaneseq
    %v287 = vshrl.u32 %v286, 7
    %v288 = vsub.s32 0, %v287
    %v289 = vrot.slane %v284, %v288
    %v290 = vmul.f32 %v190, %v289
    %v291 = vmul.f32 %v196, %v289
    %v292 = vmul.f32 %v202, %v289
    %v293 = vmul.f32 %v208, %v289
    %v294 = vmul.f32 %v214, %v289
    %v295 = vmul.f32 %v220, %v289
    %v296 = vmul.f32 %v226, %v289
    %v297 = vmul.f32 %v232, %v289
    %v298 = vmul.f32 %v238, %v289
    %v299 = vmul.f32 %v244, %v289
    %v300 = vmul.f32 %v250, %v289
    %v301 = vmul.f32 %v256, %v289
    %v302 = vmul.f32 %v262, %v289
    %v303 = vmul.f32 %v268, %v289
    %v304 = vmul.f32 %v274, %v289
    %v305 = vmul.f32 %v280, %v289
    %306 = vadd.xlane.f32.xlu0 %v290
    %v307 = vpop.xlane.xlu0 %306
    %308 = vadd.xlane.f32.xlu0 %v291
    %v309 = vpop.xlane.xlu0 %308
    %310 = vadd.xlane.f32.xlu0 %v292
    %v311 = vpop.xlane.xlu0 %310
    %312 = vadd.xlane.f32.xlu0 %v293
    %v313 = vpop.xlane.xlu0 %312
    %314 = vadd.xlane.f32.xlu0 %v294
    %v315 = vpop.xlane.xlu0 %314
    %316 = vadd.xlane.f32.xlu0 %v295
    %v317 = vpop.xlane.xlu0 %316
    %318 = vadd.xlane.f32.xlu0 %v296
    %v319 = vpop.xlane.xlu0 %318
    %320 = vadd.xlane.f32.xlu0 %v297
    %v321 = vpop.xlane.xlu0 %320
    %322 = vadd.xlane.f32.xlu0 %v298
    %v323 = vpop.xlane.xlu0 %322
    %324 = vadd.xlane.f32.xlu0 %v299
    %v325 = vpop.xlane.xlu0 %324
    %326 = vadd.xlane.f32.xlu0 %v300
    %v327 = vpop.xlane.xlu0 %326
    %328 = vadd.xlane.f32.xlu0 %v301
    %v329 = vpop.xlane.xlu0 %328
    %330 = vadd.xlane.f32.xlu0 %v302
    %v331 = vpop.xlane.xlu0 %330
    %332 = vadd.xlane.f32.xlu0 %v303
    %v333 = vpop.xlane.xlu0 %332
    %334 = vadd.xlane.f32.xlu0 %v304
    %v335 = vpop.xlane.xlu0 %334
    %336 = vadd.xlane.f32.xlu0 %v305
    %v337 = vpop.xlane.xlu0 %336
    %338 = vmatprep.subr.mxu0 0.0
    %339 = vmatpush1.xpose.msra.mxu0 %v280
    %340 = vmatprep.subr.mxu0 0.0
    %341 = vmatpush1.xpose.msra.mxu0 %v274
    %342 = vmatprep.subr.mxu0 0.0
    %343 = vmatpush1.xpose.msra.mxu0 %v268
    %344 = vmatprep.subr.mxu0 0.0
    %345 = vmatpush1.xpose.msra.mxu0 %v262
    %346 = vmatprep.subr.mxu0 0.0
    %347 = vmatpush1.xpose.msra.mxu0 %v256
    %348 = vmatprep.subr.mxu0 0.0
    %349 = vmatpush1.xpose.msra.mxu0 %v250
    %350 = vmatprep.subr.mxu0 0.0
    %351 = vmatpush1.xpose.msra.mxu0 %v244
    %352 = vmatprep.subr.mxu0 0.0
    %353 = vmatpush1.xpose.msra.mxu0 %v238
    %354 = vmatprep.subr.mxu0 0.0
    %355 = vmatpush1.xpose.msra.mxu0 %v232
    %356 = vmatprep.subr.mxu0 0.0
    %357 = vmatpush1.xpose.msra.mxu0 %v226
    %358 = vmatprep.subr.mxu0 0.0
    %359 = vmatpush1.xpose.msra.mxu0 %v220
    %360 = vmatprep.subr.mxu0 0.0
    %361 = vmatpush1.xpose.msra.mxu0 %v214
    %362 = vmatprep.subr.mxu0 0.0
    %363 = vmatpush1.xpose.msra.mxu0 %v208
    %364 = vmatprep.subr.mxu0 0.0
    %365 = vmatpush1.xpose.msra.mxu0 %v202
    %366 = vmatprep.subr.mxu0 0.0
    %367 = vmatpush1.xpose.msra.mxu0 %v196
    %368 = vmatprep.subr.mxu0 0.0
    %369 = vmatpush1.xpose.msra.mxu0 %v190
    %370 = vmatprep.subr.mxu0 0.0
    %371 = vmatpush2.xpose.msra.mxu0 0.0
    %372 = vmatprep.subr.mxu0 0.0
    %373 = vmatpush2.xpose.msra.mxu0 0.0
    %374 = vmatprep.subr.mxu0 0.0
    %375 = vmatpush2.xpose.msra.mxu0 0.0
    %376 = vmatprep.subr.mxu0 0.0
    %377 = vmatpush2.xpose.msra.mxu0 0.0
    %378 = vmatprep.subr.mxu0 0.0
    %379 = vmatpush2.xpose.msra.mxu0 0.0
    %380 = vmatprep.subr.mxu0 0.0
    %381 = vmatpush2.xpose.msra.mxu0 0.0
    %382 = vmatprep.subr.mxu0 0.0
    %383 = vmatpush2.xpose.msra.mxu0 0.0
    %384 = vmatprep.subr.mxu0 0.0
    %385 = vmatpush2.xpose.msra.mxu0 0.0
    %386 = vmatprep.subr.mxu0 0.0
    %387 = vmatpush2.xpose.msra.mxu0 0.0
    %388 = vmatprep.subr.mxu0 0.0
    %389 = vmatpush2.xpose.msra.mxu0 0.0
    %390 = vmatprep.subr.mxu0 0.0
    %391 = vmatpush2.xpose.msra.mxu0 0.0
    %392 = vmatprep.subr.mxu0 0.0
    %393 = vmatpush2.xpose.msra.mxu0 0.0
    %394 = vmatprep.subr.mxu0 0.0
    %395 = vmatpush2.xpose.msra.mxu0 0.0
    %396 = vmatprep.subr.mxu0 0.0
    %397 = vmatpush2.xpose.msra.mxu0 0.0
    %398 = vmatprep.subr.mxu0 0.0
    %399 = vmatpush2.xpose.msra.mxu0 0.0
    %400 = vmatprep.subr.mxu0 0.0
    %401 = vmatpush2.xpose.msra.mxu0 0.0
    %402 = vmatprep.mubr.f32.mxu0 0.0
    %403 = vmatmul.mubr.f32.gmra.mxu0 %v285
    %v404 = vpop.f32.mrf.mxu0
    %v405 = vadd.f32 0.0, %v404
    %v406 = vpop.f32.mrf.mxu0
    %407 = vdwg.mxu0
    %v408 = vlaneseq
    %v409 = vshrl.u32 %v408, 7
    %v410 = vsub.s32 0, %v409
    %v411 = vrot.slane %v405, %v410
    %v412 = vadd.f32 %v307, %v411
    %v413 = vadd.f32 %v309, %v411
    %v414 = vadd.f32 %v311, %v411
    %v415 = vadd.f32 %v313, %v411
    %v416 = vadd.f32 %v315, %v411
    %v417 = vadd.f32 %v317, %v411
    %v418 = vadd.f32 %v319, %v411
    %v419 = vadd.f32 %v321, %v411
    %v420 = vadd.f32 %v323, %v411
    %v421 = vadd.f32 %v325, %v411
    %v422 = vadd.f32 %v327, %v411
    %v423 = vadd.f32 %v329, %v411
    %v424 = vadd.f32 %v331, %v411
    %v425 = vadd.f32 %v333, %v411
    %v426 = vadd.f32 %v335, %v411
    %v427 = vadd.f32 %v337, %v411
    %v428 = vmul.f32 %v412, 0.2
    %v429 = vmul.f32 %v413, 0.2
    %v430 = vmul.f32 %v414, 0.2
    %v431 = vmul.f32 %v415, 0.2
    %v432 = vmul.f32 %v416, 0.2
    %v433 = vmul.f32 %v417, 0.2
    %v434 = vmul.f32 %v418, 0.2
    %v435 = vmul.f32 %v419, 0.2
    %v436 = vmul.f32 %v420, 0.2
    %v437 = vmul.f32 %v421, 0.2
    %v438 = vmul.f32 %v422, 0.2
    %v439 = vmul.f32 %v423, 0.2
    %v440 = vmul.f32 %v424, 0.2
    %v441 = vmul.f32 %v425, 0.2
    %v442 = vmul.f32 %v426, 0.2
    %v443 = vmul.f32 %v427, 0.2
    %v444 = vmax.f32 %v412, %v428
    %v445 = vmax.f32 %v413, %v429
    %v446 = vmax.f32 %v414, %v430
    %v447 = vmax.f32 %v415, %v431
    %v448 = vmax.f32 %v416, %v432
    %v449 = vmax.f32 %v417, %v433
    %v450 = vmax.f32 %v418, %v434
    %v451 = vmax.f32 %v419, %v435
    %v452 = vmax.f32 %v420, %v436
    %v453 = vmax.f32 %v421, %v437
    %v454 = vmax.f32 %v422, %v438
    %v455 = vmax.f32 %v423, %v439
    %v456 = vmax.f32 %v424, %v440
    %v457 = vmax.f32 %v425, %v441
    %v458 = vmax.f32 %v426, %v442
    %v459 = vmax.f32 %v427, %v443
    %v460 = vadd.f32 %v444, %v34
    %v461 = vadd.f32 %v445, %v35
    %v462 = vadd.f32 %v446, %v36
    %v463 = vadd.f32 %v447, %v37
    %v464 = vadd.f32 %v448, %v38
    %v465 = vadd.f32 %v449, %v39
    %v466 = vadd.f32 %v450, %v40
    %v467 = vadd.f32 %v451, %v41
    %v468 = vadd.f32 %v452, %v42
    %v469 = vadd.f32 %v453, %v43
    %v470 = vadd.f32 %v454, %v44
    %v471 = vadd.f32 %v455, %v45
    %v472 = vadd.f32 %v456, %v46
    %v473 = vadd.f32 %v457, %v47
    %v474 = vadd.f32 %v458, %v48
    %v475 = vadd.f32 %v459, %v49
    %476 = vmax.xlane.f32.xlu0 %v460
    %v477 = vpop.xlane.xlu0 %476
    %478 = vmax.xlane.f32.xlu0 %v461
    %v479 = vpop.xlane.xlu0 %478
    %480 = vmax.xlane.f32.xlu0 %v462
    %v481 = vpop.xlane.xlu0 %480
    %482 = vmax.xlane.f32.xlu0 %v463
    %v483 = vpop.xlane.xlu0 %482
    %484 = vmax.xlane.f32.xlu0 %v464
    %v485 = vpop.xlane.xlu0 %484
    %486 = vmax.xlane.f32.xlu0 %v465
    %v487 = vpop.xlane.xlu0 %486
    %488 = vmax.xlane.f32.xlu0 %v466
    %v489 = vpop.xlane.xlu0 %488
    %490 = vmax.xlane.f32.xlu0 %v467
    %v491 = vpop.xlane.xlu0 %490
    %492 = vmax.xlane.f32.xlu0 %v468
    %v493 = vpop.xlane.xlu0 %492
    %494 = vmax.xlane.f32.xlu0 %v469
    %v495 = vpop.xlane.xlu0 %494
    %496 = vmax.xlane.f32.xlu0 %v470
    %v497 = vpop.xlane.xlu0 %496
    %498 = vmax.xlane.f32.xlu0 %v471
    %v499 = vpop.xlane.xlu0 %498
    %500 = vmax.xlane.f32.xlu0 %v472
    %v501 = vpop.xlane.xlu0 %500
    %502 = vmax.xlane.f32.xlu0 %v473
    %v503 = vpop.xlane.xlu0 %502
    %504 = vmax.xlane.f32.xlu0 %v474
    %v505 = vpop.xlane.xlu0 %504
    %506 = vmax.xlane.f32.xlu0 %v475
    %v507 = vpop.xlane.xlu0 %506
    %v508 = vsub.f32 %v460, %v477
    %v509 = vsub.f32 %v461, %v479
    %v510 = vsub.f32 %v462, %v481
    %v511 = vsub.f32 %v463, %v483
    %v512 = vsub.f32 %v464, %v485
    %v513 = vsub.f32 %v465, %v487
    %v514 = vsub.f32 %v466, %v489
    %v515 = vsub.f32 %v467, %v491
    %v516 = vsub.f32 %v468, %v493
    %v517 = vsub.f32 %v469, %v495
    %v518 = vsub.f32 %v470, %v497
    %v519 = vsub.f32 %v471, %v499
    %v520 = vsub.f32 %v472, %v501
    %v521 = vsub.f32 %v473, %v503
    %v522 = vsub.f32 %v474, %v505
    %v523 = vsub.f32 %v475, %v507
    %v524 = vmul.f32 %v508, 1.442695
    %v525 = vpow.pop %v524
    %v526 = vmul.f32 %v509, 1.442695
    %v527 = vpow.pop %v526
    %v528 = vmul.f32 %v510, 1.442695
    %v529 = vpow.pop %v528
    %v530 = vmul.f32 %v511, 1.442695
    %v531 = vpow.pop %v530
    %v532 = vmul.f32 %v512, 1.442695
    %v533 = vpow.pop %v532
    %v534 = vmul.f32 %v513, 1.442695
    %v535 = vpow.pop %v534
    %v536 = vmul.f32 %v514, 1.442695
    %v537 = vpow.pop %v536
    %v538 = vmul.f32 %v515, 1.442695
    %v539 = vpow.pop %v538
    %v540 = vmul.f32 %v516, 1.442695
    %v541 = vpow.pop %v540
    %v542 = vmul.f32 %v517, 1.442695
    %v543 = vpow.pop %v542
    %v544 = vmul.f32 %v518, 1.442695
    %v545 = vpow.pop %v544
    %v546 = vmul.f32 %v519, 1.442695
    %v547 = vpow.pop %v546
    %v548 = vmul.f32 %v520, 1.442695
    %v549 = vpow.pop %v548
    %v550 = vmul.f32 %v521, 1.442695
    %v551 = vpow.pop %v550
    %v552 = vmul.f32 %v522, 1.442695
    %v553 = vpow.pop %v552
    %v554 = vmul.f32 %v523, 1.442695
    %v555 = vpow.pop %v554
    %556 = vadd.xlane.f32.xlu0 %v525
    %v557 = vpop.xlane.xlu0 %556
    %558 = vadd.xlane.f32.xlu0 %v527
    %v559 = vpop.xlane.xlu0 %558
    %560 = vadd.xlane.f32.xlu0 %v529
    %v561 = vpop.xlane.xlu0 %560
    %562 = vadd.xlane.f32.xlu0 %v531
    %v563 = vpop.xlane.xlu0 %562
    %564 = vadd.xlane.f32.xlu0 %v533
    %v565 = vpop.xlane.xlu0 %564
    %566 = vadd.xlane.f32.xlu0 %v535
    %v567 = vpop.xlane.xlu0 %566
    %568 = vadd.xlane.f32.xlu0 %v537
    %v569 = vpop.xlane.xlu0 %568
    %570 = vadd.xlane.f32.xlu0 %v539
    %v571 = vpop.xlane.xlu0 %570
    %572 = vadd.xlane.f32.xlu0 %v541
    %v573 = vpop.xlane.xlu0 %572
    %574 = vadd.xlane.f32.xlu0 %v543
    %v575 = vpop.xlane.xlu0 %574
    %576 = vadd.xlane.f32.xlu0 %v545
    %v577 = vpop.xlane.xlu0 %576
    %578 = vadd.xlane.f32.xlu0 %v547
    %v579 = vpop.xlane.xlu0 %578
    %580 = vadd.xlane.f32.xlu0 %v549
    %v581 = vpop.xlane.xlu0 %580
    %582 = vadd.xlane.f32.xlu0 %v551
    %v583 = vpop.xlane.xlu0 %582
    %584 = vadd.xlane.f32.xlu0 %v553
    %v585 = vpop.xlane.xlu0 %584
    %586 = vadd.xlane.f32.xlu0 %v555
    %v587 = vpop.xlane.xlu0 %586
    %v588 = vrcp.pop %v557
    %v589 = vrcp.pop %v559
    %v590 = vrcp.pop %v561
    %v591 = vrcp.pop %v563
    %v592 = vrcp.pop %v565
    %v593 = vrcp.pop %v567
    %v594 = vrcp.pop %v569
    %v595 = vrcp.pop %v571
    %v596 = vrcp.pop %v573
    %v597 = vrcp.pop %v575
    %v598 = vrcp.pop %v577
    %v599 = vrcp.pop %v579
    %v600 = vrcp.pop %v581
    %v601 = vrcp.pop %v583
    %v602 = vrcp.pop %v585
    %v603 = vrcp.pop %v587
    %v604 = vmul.f32 %v525, %v588
    %v605 = vmul.f32 %v527, %v589
    %v606 = vmul.f32 %v529, %v590
    %v607 = vmul.f32 %v531, %v591
    %v608 = vmul.f32 %v533, %v592
    %v609 = vmul.f32 %v535, %v593
    %v610 = vmul.f32 %v537, %v594
    %v611 = vmul.f32 %v539, %v595
    %v612 = vmul.f32 %v541, %v596
    %v613 = vmul.f32 %v543, %v597
    %v614 = vmul.f32 %v545, %v598
    %v615 = vmul.f32 %v547, %v599
    %v616 = vmul.f32 %v549, %v600
    %v617 = vmul.f32 %v551, %v601
    %v618 = vmul.f32 %v553, %v602
    %v619 = vmul.f32 %v555, %v603
    %620 = vmatprep.subr.mxu0 0.0
    %621 = vmatpush1.msra.mxu0 %v280
    %622 = vmatprep.subr.mxu0 0.0
    %623 = vmatpush1.msra.mxu0 %v274
    %624 = vmatprep.subr.mxu0 0.0
    %625 = vmatpush1.msra.mxu0 %v268
    %626 = vmatprep.subr.mxu0 0.0
    %627 = vmatpush1.msra.mxu0 %v262
    %628 = vmatprep.subr.mxu0 0.0
    %629 = vmatpush1.msra.mxu0 %v256
    %630 = vmatprep.subr.mxu0 0.0
    %631 = vmatpush1.msra.mxu0 %v250
    %632 = vmatprep.subr.mxu0 0.0
    %633 = vmatpush1.msra.mxu0 %v244
    %634 = vmatprep.subr.mxu0 0.0
    %635 = vmatpush1.msra.mxu0 %v238
    %636 = vmatprep.subr.mxu0 0.0
    %637 = vmatpush1.msra.mxu0 %v232
    %638 = vmatprep.subr.mxu0 0.0
    %639 = vmatpush1.msra.mxu0 %v226
    %640 = vmatprep.subr.mxu0 0.0
    %641 = vmatpush1.msra.mxu0 %v220
    %642 = vmatprep.subr.mxu0 0.0
    %643 = vmatpush1.msra.mxu0 %v214
    %644 = vmatprep.subr.mxu0 0.0
    %645 = vmatpush1.msra.mxu0 %v208
    %646 = vmatprep.subr.mxu0 0.0
    %647 = vmatpush1.msra.mxu0 %v202
    %648 = vmatprep.subr.mxu0 0.0
    %649 = vmatpush1.msra.mxu0 %v196
    %650 = vmatprep.subr.mxu0 0.0
    %651 = vmatpush1.msra.mxu0 %v190
    %652 = vmatprep.subr.mxu0 0.0
    %653 = vmatpush2.msra.mxu0 0.0
    %654 = vmatprep.subr.mxu0 0.0
    %655 = vmatpush2.msra.mxu0 0.0
    %656 = vmatprep.subr.mxu0 0.0
    %657 = vmatpush2.msra.mxu0 0.0
    %658 = vmatprep.subr.mxu0 0.0
    %659 = vmatpush2.msra.mxu0 0.0
    %660 = vmatprep.subr.mxu0 0.0
    %661 = vmatpush2.msra.mxu0 0.0
    %662 = vmatprep.subr.mxu0 0.0
    %663 = vmatpush2.msra.mxu0 0.0
    %664 = vmatprep.subr.mxu0 0.0
    %665 = vmatpush2.msra.mxu0 0.0
    %666 = vmatprep.subr.mxu0 0.0
    %667 = vmatpush2.msra.mxu0 0.0
    %668 = vmatprep.subr.mxu0 0.0
    %669 = vmatpush2.msra.mxu0 0.0
    %670 = vmatprep.subr.mxu0 0.0
    %671 = vmatpush2.msra.mxu0 0.0
    %672 = vmatprep.subr.mxu0 0.0
    %673 = vmatpush2.msra.mxu0 0.0
    %674 = vmatprep.subr.mxu0 0.0
    %675 = vmatpush2.msra.mxu0 0.0
    %676 = vmatprep.subr.mxu0 0.0
    %677 = vmatpush2.msra.mxu0 0.0
    %678 = vmatprep.subr.mxu0 0.0
    %679 = vmatpush2.msra.mxu0 0.0
    %680 = vmatprep.subr.mxu0 0.0
    %681 = vmatpush2.msra.mxu0 0.0
    %682 = vmatprep.subr.mxu0 0.0
    %683 = vmatpush2.msra.mxu0 0.0
    %684 = vmatprep.mubr.f32.mxu0 0.0
    %685 = vmatmul.mubr.f32.gmra.mxu0 %v604
    %v686 = vpop.f32.mrf.mxu0
    %v687 = vadd.f32 0.0, %v686
    %v688 = vpop.f32.mrf.mxu0
    %689 = vmatprep.mubr.f32.mxu0 0.0
    %690 = vmatmul.mubr.f32.gmra.mxu0 %v605
    %v691 = vpop.f32.mrf.mxu0
    %v692 = vadd.f32 0.0, %v691
    %v693 = vpop.f32.mrf.mxu0
    %694 = vmatprep.mubr.f32.mxu0 0.0
    %695 = vmatmul.mubr.f32.gmra.mxu0 %v606
    %v696 = vpop.f32.mrf.mxu0
    %v697 = vadd.f32 0.0, %v696
    %v698 = vpop.f32.mrf.mxu0
    %699 = vmatprep.mubr.f32.mxu0 0.0
    %700 = vmatmul.mubr.f32.gmra.mxu0 %v607
    %v701 = vpop.f32.mrf.mxu0
    %v702 = vadd.f32 0.0, %v701
    %v703 = vpop.f32.mrf.mxu0
    %704 = vmatprep.mubr.f32.mxu0 0.0
    %705 = vmatmul.mubr.f32.gmra.mxu0 %v608
    %v706 = vpop.f32.mrf.mxu0
    %v707 = vadd.f32 0.0, %v706
    %v708 = vpop.f32.mrf.mxu0
    %709 = vmatprep.mubr.f32.mxu0 0.0
    %710 = vmatmul.mubr.f32.gmra.mxu0 %v609
    %v711 = vpop.f32.mrf.mxu0
    %v712 = vadd.f32 0.0, %v711
    %v713 = vpop.f32.mrf.mxu0
    %714 = vmatprep.mubr.f32.mxu0 0.0
    %715 = vmatmul.mubr.f32.gmra.mxu0 %v610
    %v716 = vpop.f32.mrf.mxu0
    %v717 = vadd.f32 0.0, %v716
    %v718 = vpop.f32.mrf.mxu0
    %719 = vmatprep.mubr.f32.mxu0 0.0
    %720 = vmatmul.mubr.f32.gmra.mxu0 %v611
    %v721 = vpop.f32.mrf.mxu0
    %v722 = vadd.f32 0.0, %v721
    %v723 = vpop.f32.mrf.mxu0
    %724 = vmatprep.mubr.f32.mxu0 0.0
    %725 = vmatmul.mubr.f32.gmra.mxu0 %v612
    %v726 = vpop.f32.mrf.mxu0
    %v727 = vadd.f32 0.0, %v726
    %v728 = vpop.f32.mrf.mxu0
    %729 = vmatprep.mubr.f32.mxu0 0.0
    %730 = vmatmul.mubr.f32.gmra.mxu0 %v613
    %v731 = vpop.f32.mrf.mxu0
    %v732 = vadd.f32 0.0, %v731
    %v733 = vpop.f32.mrf.mxu0
    %734 = vmatprep.mubr.f32.mxu0 0.0
    %735 = vmatmul.mubr.f32.gmra.mxu0 %v614
    %v736 = vpop.f32.mrf.mxu0
    %v737 = vadd.f32 0.0, %v736
    %v738 = vpop.f32.mrf.mxu0
    %739 = vmatprep.mubr.f32.mxu0 0.0
    %740 = vmatmul.mubr.f32.gmra.mxu0 %v615
    %v741 = vpop.f32.mrf.mxu0
    %v742 = vadd.f32 0.0, %v741
    %v743 = vpop.f32.mrf.mxu0
    %744 = vmatprep.mubr.f32.mxu0 0.0
    %745 = vmatmul.mubr.f32.gmra.mxu0 %v616
    %v746 = vpop.f32.mrf.mxu0
    %v747 = vadd.f32 0.0, %v746
    %v748 = vpop.f32.mrf.mxu0
    %749 = vmatprep.mubr.f32.mxu0 0.0
    %750 = vmatmul.mubr.f32.gmra.mxu0 %v617
    %v751 = vpop.f32.mrf.mxu0
    %v752 = vadd.f32 0.0, %v751
    %v753 = vpop.f32.mrf.mxu0
    %754 = vmatprep.mubr.f32.mxu0 0.0
    %755 = vmatmul.mubr.f32.gmra.mxu0 %v618
    %v756 = vpop.f32.mrf.mxu0
    %v757 = vadd.f32 0.0, %v756
    %v758 = vpop.f32.mrf.mxu0
    %759 = vmatprep.mubr.f32.mxu0 0.0
    %760 = vmatmul.mubr.f32.gmra.mxu0 %v619
    %v761 = vpop.f32.mrf.mxu0
    %v762 = vadd.f32 0.0, %v761
    %v763 = vpop.f32.mrf.mxu0
    %764 = vdwg.mxu0
    %vm765 = vcmp.gt.f32.partialorder %v687, 0.0
    %vm766 = vcmp.gt.f32.partialorder %v692, 0.0
    %vm767 = vcmp.gt.f32.partialorder %v697, 0.0
    %vm768 = vcmp.gt.f32.partialorder %v702, 0.0
    %vm769 = vcmp.gt.f32.partialorder %v707, 0.0
    %vm770 = vcmp.gt.f32.partialorder %v712, 0.0
    %vm771 = vcmp.gt.f32.partialorder %v717, 0.0
    %vm772 = vcmp.gt.f32.partialorder %v722, 0.0
    %vm773 = vcmp.gt.f32.partialorder %v727, 0.0
    %vm774 = vcmp.gt.f32.partialorder %v732, 0.0
    %vm775 = vcmp.gt.f32.partialorder %v737, 0.0
    %vm776 = vcmp.gt.f32.partialorder %v742, 0.0
    %vm777 = vcmp.gt.f32.partialorder %v747, 0.0
    %vm778 = vcmp.gt.f32.partialorder %v752, 0.0
    %vm779 = vcmp.gt.f32.partialorder %v757, 0.0
    %vm780 = vcmp.gt.f32.partialorder %v762, 0.0
    %v781 = vmul.f32 %v687, 1.442695
    %v782 = vpow.pop %v781
    %v783 = vmul.f32 %v692, 1.442695
    %v784 = vpow.pop %v783
    %v785 = vmul.f32 %v697, 1.442695
    %v786 = vpow.pop %v785
    %v787 = vmul.f32 %v702, 1.442695
    %v788 = vpow.pop %v787
    %v789 = vmul.f32 %v707, 1.442695
    %v790 = vpow.pop %v789
    %v791 = vmul.f32 %v712, 1.442695
    %v792 = vpow.pop %v791
    %v793 = vmul.f32 %v717, 1.442695
    %v794 = vpow.pop %v793
    %v795 = vmul.f32 %v722, 1.442695
    %v796 = vpow.pop %v795
    %v797 = vmul.f32 %v727, 1.442695
    %v798 = vpow.pop %v797
    %v799 = vmul.f32 %v732, 1.442695
    %v800 = vpow.pop %v799
    %v801 = vmul.f32 %v737, 1.442695
    %v802 = vpow.pop %v801
    %v803 = vmul.f32 %v742, 1.442695
    %v804 = vpow.pop %v803
    %v805 = vmul.f32 %v747, 1.442695
    %v806 = vpow.pop %v805
    %v807 = vmul.f32 %v752, 1.442695
    %v808 = vpow.pop %v807
    %v809 = vmul.f32 %v757, 1.442695
    %v810 = vpow.pop %v809
    %v811 = vmul.f32 %v762, 1.442695
    %v812 = vpow.pop %v811
    %v813 = vsub.f32 %v782, 1.0
    %v814 = vsub.f32 %v784, 1.0
    %v815 = vsub.f32 %v786, 1.0
    %v816 = vsub.f32 %v788, 1.0
    %v817 = vsub.f32 %v790, 1.0
    %v818 = vsub.f32 %v792, 1.0
    %v819 = vsub.f32 %v794, 1.0
    %v820 = vsub.f32 %v796, 1.0
    %v821 = vsub.f32 %v798, 1.0
    %v822 = vsub.f32 %v800, 1.0
    %v823 = vsub.f32 %v802, 1.0
    %v824 = vsub.f32 %v804, 1.0
    %v825 = vsub.f32 %v806, 1.0
    %v826 = vsub.f32 %v808, 1.0
    %v827 = vsub.f32 %v810, 1.0
    %v828 = vsub.f32 %v812, 1.0
    %v829 = vsel %vm765, %v687, %v813
    %v830 = vsel %vm766, %v692, %v814
    %v831 = vsel %vm767, %v697, %v815
    %v832 = vsel %vm768, %v702, %v816
    %v833 = vsel %vm769, %v707, %v817
    %v834 = vsel %vm770, %v712, %v818
    %v835 = vsel %vm771, %v717, %v819
    %v836 = vsel %vm772, %v722, %v820
    %v837 = vsel %vm773, %v727, %v821
    %v838 = vsel %vm774, %v732, %v822
    %v839 = vsel %vm775, %v737, %v823
    %v840 = vsel %vm776, %v742, %v824
    %v841 = vsel %vm777, %v747, %v825
    %v842 = vsel %vm778, %v752, %v826
    %v843 = vsel %vm779, %v757, %v827
    %v844 = vsel %vm780, %v762, %v828
    %v845 = vld [vmem:[%s5] sm:$0xff]
    %v846 = vld [vmem:[%s5 + $0x8] sm:$0xff]
    %v847 = vld [vmem:[%s5 + $0x10] sm:$0xff]
    %v848 = vld [vmem:[%s5 + $0x18] sm:$0xff]
    %v849 = vld [vmem:[%s5 + $0x20] sm:$0xff]
    %v850 = vld [vmem:[%s5 + $0x28] sm:$0xff]
    %v851 = vld [vmem:[%s5 + $0x30] sm:$0xff]
    %v852 = vld [vmem:[%s5 + $0x38] sm:$0xff]
    %v853 = vld [vmem:[%s5 + $0x40] sm:$0xff]
    %v854 = vld [vmem:[%s5 + $0x48] sm:$0xff]
    %v855 = vld [vmem:[%s5 + $0x50] sm:$0xff]
    %v856 = vld [vmem:[%s5 + $0x58] sm:$0xff]
    %v857 = vld [vmem:[%s5 + $0x60] sm:$0xff]
    %v858 = vld [vmem:[%s5 + $0x68] sm:$0xff]
    %v859 = vld [vmem:[%s5 + $0x70] sm:$0xff]
    %v860 = vld [vmem:[%s5 + $0x78] sm:$0xff]
    %v861 = vld [vmem:[%s3 + $0x1] sm:$0x1]
    %v862 = vld [vmem:[%s4 + $0x1] sm:$0x1]
    %v863 = vlaneseq
    %v864 = vshrl.u32 %v863, 7
    %v865 = vsub.s32 0, %v864
    %v866 = vrot.slane %v861, %v865
    %v867 = vmul.f32 %v192, %v866
    %v868 = vmul.f32 %v198, %v866
    %v869 = vmul.f32 %v204, %v866
    %v870 = vmul.f32 %v210, %v866
    %v871 = vmul.f32 %v216, %v866
    %v872 = vmul.f32 %v222, %v866
    %v873 = vmul.f32 %v228, %v866
    %v874 = vmul.f32 %v234, %v866
    %v875 = vmul.f32 %v240, %v866
    %v876 = vmul.f32 %v246, %v866
    %v877 = vmul.f32 %v252, %v866
    %v878 = vmul.f32 %v258, %v866
    %v879 = vmul.f32 %v264, %v866
    %v880 = vmul.f32 %v270, %v866
    %v881 = vmul.f32 %v276, %v866
    %v882 = vmul.f32 %v282, %v866
    %883 = vadd.xlane.f32.xlu0 %v867
    %v884 = vpop.xlane.xlu0 %883
    %885 = vadd.xlane.f32.xlu0 %v868
    %v886 = vpop.xlane.xlu0 %885
    %887 = vadd.xlane.f32.xlu0 %v869
    %v888 = vpop.xlane.xlu0 %887
    %889 = vadd.xlane.f32.xlu0 %v870
    %v890 = vpop.xlane.xlu0 %889
    %891 = vadd.xlane.f32.xlu0 %v871
    %v892 = vpop.xlane.xlu0 %891
    %893 = vadd.xlane.f32.xlu0 %v872
    %v894 = vpop.xlane.xlu0 %893
    %895 = vadd.xlane.f32.xlu0 %v873
    %v896 = vpop.xlane.xlu0 %895
    %897 = vadd.xlane.f32.xlu0 %v874
    %v898 = vpop.xlane.xlu0 %897
    %899 = vadd.xlane.f32.xlu0 %v875
    %v900 = vpop.xlane.xlu0 %899
    %901 = vadd.xlane.f32.xlu0 %v876
    %v902 = vpop.xlane.xlu0 %901
    %903 = vadd.xlane.f32.xlu0 %v877
    %v904 = vpop.xlane.xlu0 %903
    %905 = vadd.xlane.f32.xlu0 %v878
    %v906 = vpop.xlane.xlu0 %905
    %907 = vadd.xlane.f32.xlu0 %v879
    %v908 = vpop.xlane.xlu0 %907
    %909 = vadd.xlane.f32.xlu0 %v880
    %v910 = vpop.xlane.xlu0 %909
    %911 = vadd.xlane.f32.xlu0 %v881
    %v912 = vpop.xlane.xlu0 %911
    %913 = vadd.xlane.f32.xlu0 %v882
    %v914 = vpop.xlane.xlu0 %913
    %915 = vmatprep.subr.mxu0 0.0
    %916 = vmatpush1.xpose.msra.mxu0 %v282
    %917 = vmatprep.subr.mxu0 0.0
    %918 = vmatpush1.xpose.msra.mxu0 %v276
    %919 = vmatprep.subr.mxu0 0.0
    %920 = vmatpush1.xpose.msra.mxu0 %v270
    %921 = vmatprep.subr.mxu0 0.0
    %922 = vmatpush1.xpose.msra.mxu0 %v264
    %923 = vmatprep.subr.mxu0 0.0
    %924 = vmatpush1.xpose.msra.mxu0 %v258
    %925 = vmatprep.subr.mxu0 0.0
    %926 = vmatpush1.xpose.msra.mxu0 %v252
    %927 = vmatprep.subr.mxu0 0.0
    %928 = vmatpush1.xpose.msra.mxu0 %v246
    %929 = vmatprep.subr.mxu0 0.0
    %930 = vmatpush1.xpose.msra.mxu0 %v240
    %931 = vmatprep.subr.mxu0 0.0
    %932 = vmatpush1.xpose.msra.mxu0 %v234
    %933 = vmatprep.subr.mxu0 0.0
    %934 = vmatpush1.xpose.msra.mxu0 %v228
    %935 = vmatprep.subr.mxu0 0.0
    %936 = vmatpush1.xpose.msra.mxu0 %v222
    %937 = vmatprep.subr.mxu0 0.0
    %938 = vmatpush1.xpose.msra.mxu0 %v216
    %939 = vmatprep.subr.mxu0 0.0
    %940 = vmatpush1.xpose.msra.mxu0 %v210
    %941 = vmatprep.subr.mxu0 0.0
    %942 = vmatpush1.xpose.msra.mxu0 %v204
    %943 = vmatprep.subr.mxu0 0.0
    %944 = vmatpush1.xpose.msra.mxu0 %v198
    %945 = vmatprep.subr.mxu0 0.0
    %946 = vmatpush1.xpose.msra.mxu0 %v192
    %947 = vmatprep.subr.mxu0 0.0
    %948 = vmatpush2.xpose.msra.mxu0 0.0
    %949 = vmatprep.subr.mxu0 0.0
    %950 = vmatpush2.xpose.msra.mxu0 0.0
    %951 = vmatprep.subr.mxu0 0.0
    %952 = vmatpush2.xpose.msra.mxu0 0.0
    %953 = vmatprep.subr.mxu0 0.0
    %954 = vmatpush2.xpose.msra.mxu0 0.0
    %955 = vmatprep.subr.mxu0 0.0
    %956 = vmatpush2.xpose.msra.mxu0 0.0
    %957 = vmatprep.subr.mxu0 0.0
    %958 = vmatpush2.xpose.msra.mxu0 0.0
    %959 = vmatprep.subr.mxu0 0.0
    %960 = vmatpush2.xpose.msra.mxu0 0.0
    %961 = vmatprep.subr.mxu0 0.0
    %962 = vmatpush2.xpose.msra.mxu0 0.0
    %963 = vmatprep.subr.mxu0 0.0
    %964 = vmatpush2.xpose.msra.mxu0 0.0
    %965 = vmatprep.subr.mxu0 0.0
    %966 = vmatpush2.xpose.msra.mxu0 0.0
    %967 = vmatprep.subr.mxu0 0.0
    %968 = vmatpush2.xpose.msra.mxu0 0.0
    %969 = vmatprep.subr.mxu0 0.0
    %970 = vmatpush2.xpose.msra.mxu0 0.0
    %971 = vmatprep.subr.mxu0 0.0
    %972 = vmatpush2.xpose.msra.mxu0 0.0
    %973 = vmatprep.subr.mxu0 0.0
    %974 = vmatpush2.xpose.msra.mxu0 0.0
    %975 = vmatprep.subr.mxu0 0.0
    %976 = vmatpush2.xpose.msra.mxu0 0.0
    %977 = vmatprep.subr.mxu0 0.0
    %978 = vmatpush2.xpose.msra.mxu0 0.0
    %979 = vmatprep.mubr.f32.mxu0 0.0
    %980 = vmatmul.mubr.f32.gmra.mxu0 %v862
    %v981 = vpop.f32.mrf.mxu0
    %v982 = vadd.f32 0.0, %v981
    %v983 = vpop.f32.mrf.mxu0
    %984 = vdwg.mxu0
    %v985 = vlaneseq
    %v986 = vshrl.u32 %v985, 7
    %v987 = vsub.s32 0, %v986
    %v988 = vrot.slane %v982, %v987
    %v989 = vadd.f32 %v884, %v988
    %v990 = vadd.f32 %v886, %v988
    %v991 = vadd.f32 %v888, %v988
    %v992 = vadd.f32 %v890, %v988
    %v993 = vadd.f32 %v892, %v988
    %v994 = vadd.f32 %v894, %v988
    %v995 = vadd.f32 %v896, %v988
    %v996 = vadd.f32 %v898, %v988
    %v997 = vadd.f32 %v900, %v988
    %v998 = vadd.f32 %v902, %v988
    %v999 = vadd.f32 %v904, %v988
    %v1000 = vadd.f32 %v906, %v988
    %v1001 = vadd.f32 %v908, %v988
    %v1002 = vadd.f32 %v910, %v988
    %v1003 = vadd.f32 %v912, %v988
    %v1004 = vadd.f32 %v914, %v988
    %v1005 = vmul.f32 %v989, 0.2
    %v1006 = vmul.f32 %v990, 0.2
    %v1007 = vmul.f32 %v991, 0.2
    %v1008 = vmul.f32 %v992, 0.2
    %v1009 = vmul.f32 %v993, 0.2
    %v1010 = vmul.f32 %v994, 0.2
    %v1011 = vmul.f32 %v995, 0.2
    %v1012 = vmul.f32 %v996, 0.2
    %v1013 = vmul.f32 %v997, 0.2
    %v1014 = vmul.f32 %v998, 0.2
    %v1015 = vmul.f32 %v999, 0.2
    %v1016 = vmul.f32 %v1000, 0.2
    %v1017 = vmul.f32 %v1001, 0.2
    %v1018 = vmul.f32 %v1002, 0.2
    %v1019 = vmul.f32 %v1003, 0.2
    %v1020 = vmul.f32 %v1004, 0.2
    %v1021 = vmax.f32 %v989, %v1005
    %v1022 = vmax.f32 %v990, %v1006
    %v1023 = vmax.f32 %v991, %v1007
    %v1024 = vmax.f32 %v992, %v1008
    %v1025 = vmax.f32 %v993, %v1009
    %v1026 = vmax.f32 %v994, %v1010
    %v1027 = vmax.f32 %v995, %v1011
    %v1028 = vmax.f32 %v996, %v1012
    %v1029 = vmax.f32 %v997, %v1013
    %v1030 = vmax.f32 %v998, %v1014
    %v1031 = vmax.f32 %v999, %v1015
    %v1032 = vmax.f32 %v1000, %v1016
    %v1033 = vmax.f32 %v1001, %v1017
    %v1034 = vmax.f32 %v1002, %v1018
    %v1035 = vmax.f32 %v1003, %v1019
    %v1036 = vmax.f32 %v1004, %v1020
    %v1037 = vadd.f32 %v1021, %v34
    %v1038 = vadd.f32 %v1022, %v35
    %v1039 = vadd.f32 %v1023, %v36
    %v1040 = vadd.f32 %v1024, %v37
    %v1041 = vadd.f32 %v1025, %v38
    %v1042 = vadd.f32 %v1026, %v39
    %v1043 = vadd.f32 %v1027, %v40
    %v1044 = vadd.f32 %v1028, %v41
    %v1045 = vadd.f32 %v1029, %v42
    %v1046 = vadd.f32 %v1030, %v43
    %v1047 = vadd.f32 %v1031, %v44
    %v1048 = vadd.f32 %v1032, %v45
    %v1049 = vadd.f32 %v1033, %v46
    %v1050 = vadd.f32 %v1034, %v47
    %v1051 = vadd.f32 %v1035, %v48
    %v1052 = vadd.f32 %v1036, %v49
    %1053 = vmax.xlane.f32.xlu0 %v1037
    %v1054 = vpop.xlane.xlu0 %1053
    %1055 = vmax.xlane.f32.xlu0 %v1038
    %v1056 = vpop.xlane.xlu0 %1055
    %1057 = vmax.xlane.f32.xlu0 %v1039
    %v1058 = vpop.xlane.xlu0 %1057
    %1059 = vmax.xlane.f32.xlu0 %v1040
    %v1060 = vpop.xlane.xlu0 %1059
    %1061 = vmax.xlane.f32.xlu0 %v1041
    %v1062 = vpop.xlane.xlu0 %1061
    %1063 = vmax.xlane.f32.xlu0 %v1042
    %v1064 = vpop.xlane.xlu0 %1063
    %1065 = vmax.xlane.f32.xlu0 %v1043
    %v1066 = vpop.xlane.xlu0 %1065
    %1067 = vmax.xlane.f32.xlu0 %v1044
    %v1068 = vpop.xlane.xlu0 %1067
    %1069 = vmax.xlane.f32.xlu0 %v1045
    %v1070 = vpop.xlane.xlu0 %1069
    %1071 = vmax.xlane.f32.xlu0 %v1046
    %v1072 = vpop.xlane.xlu0 %1071
    %1073 = vmax.xlane.f32.xlu0 %v1047
    %v1074 = vpop.xlane.xlu0 %1073
    %1075 = vmax.xlane.f32.xlu0 %v1048
    %v1076 = vpop.xlane.xlu0 %1075
    %1077 = vmax.xlane.f32.xlu0 %v1049
    %v1078 = vpop.xlane.xlu0 %1077
    %1079 = vmax.xlane.f32.xlu0 %v1050
    %v1080 = vpop.xlane.xlu0 %1079
    %1081 = vmax.xlane.f32.xlu0 %v1051
    %v1082 = vpop.xlane.xlu0 %1081
    %1083 = vmax.xlane.f32.xlu0 %v1052
    %v1084 = vpop.xlane.xlu0 %1083
    %v1085 = vsub.f32 %v1037, %v1054
    %v1086 = vsub.f32 %v1038, %v1056
    %v1087 = vsub.f32 %v1039, %v1058
    %v1088 = vsub.f32 %v1040, %v1060
    %v1089 = vsub.f32 %v1041, %v1062
    %v1090 = vsub.f32 %v1042, %v1064
    %v1091 = vsub.f32 %v1043, %v1066
    %v1092 = vsub.f32 %v1044, %v1068
    %v1093 = vsub.f32 %v1045, %v1070
    %v1094 = vsub.f32 %v1046, %v1072
    %v1095 = vsub.f32 %v1047, %v1074
    %v1096 = vsub.f32 %v1048, %v1076
    %v1097 = vsub.f32 %v1049, %v1078
    %v1098 = vsub.f32 %v1050, %v1080
    %v1099 = vsub.f32 %v1051, %v1082
    %v1100 = vsub.f32 %v1052, %v1084
    %v1101 = vmul.f32 %v1085, 1.442695
    %v1102 = vpow.pop %v1101
    %v1103 = vmul.f32 %v1086, 1.442695
    %v1104 = vpow.pop %v1103
    %v1105 = vmul.f32 %v1087, 1.442695
    %v1106 = vpow.pop %v1105
    %v1107 = vmul.f32 %v1088, 1.442695
    %v1108 = vpow.pop %v1107
    %v1109 = vmul.f32 %v1089, 1.442695
    %v1110 = vpow.pop %v1109
    %v1111 = vmul.f32 %v1090, 1.442695
    %v1112 = vpow.pop %v1111
    %v1113 = vmul.f32 %v1091, 1.442695
    %v1114 = vpow.pop %v1113
    %v1115 = vmul.f32 %v1092, 1.442695
    %v1116 = vpow.pop %v1115
    %v1117 = vmul.f32 %v1093, 1.442695
    %v1118 = vpow.pop %v1117
    %v1119 = vmul.f32 %v1094, 1.442695
    %v1120 = vpow.pop %v1119
    %v1121 = vmul.f32 %v1095, 1.442695
    %v1122 = vpow.pop %v1121
    %v1123 = vmul.f32 %v1096, 1.442695
    %v1124 = vpow.pop %v1123
    %v1125 = vmul.f32 %v1097, 1.442695
    %v1126 = vpow.pop %v1125
    %v1127 = vmul.f32 %v1098, 1.442695
    %v1128 = vpow.pop %v1127
    %v1129 = vmul.f32 %v1099, 1.442695
    %v1130 = vpow.pop %v1129
    %v1131 = vmul.f32 %v1100, 1.442695
    %v1132 = vpow.pop %v1131
    %1133 = vadd.xlane.f32.xlu0 %v1102
    %v1134 = vpop.xlane.xlu0 %1133
    %1135 = vadd.xlane.f32.xlu0 %v1104
    %v1136 = vpop.xlane.xlu0 %1135
    %1137 = vadd.xlane.f32.xlu0 %v1106
    %v1138 = vpop.xlane.xlu0 %1137
    %1139 = vadd.xlane.f32.xlu0 %v1108
    %v1140 = vpop.xlane.xlu0 %1139
    %1141 = vadd.xlane.f32.xlu0 %v1110
    %v1142 = vpop.xlane.xlu0 %1141
    %1143 = vadd.xlane.f32.xlu0 %v1112
    %v1144 = vpop.xlane.xlu0 %1143
    %1145 = vadd.xlane.f32.xlu0 %v1114
    %v1146 = vpop.xlane.xlu0 %1145
    %1147 = vadd.xlane.f32.xlu0 %v1116
    %v1148 = vpop.xlane.xlu0 %1147
    %1149 = vadd.xlane.f32.xlu0 %v1118
    %v1150 = vpop.xlane.xlu0 %1149
    %1151 = vadd.xlane.f32.xlu0 %v1120
    %v1152 = vpop.xlane.xlu0 %1151
    %1153 = vadd.xlane.f32.xlu0 %v1122
    %v1154 = vpop.xlane.xlu0 %1153
    %1155 = vadd.xlane.f32.xlu0 %v1124
    %v1156 = vpop.xlane.xlu0 %1155
    %1157 = vadd.xlane.f32.xlu0 %v1126
    %v1158 = vpop.xlane.xlu0 %1157
    %1159 = vadd.xlane.f32.xlu0 %v1128
    %v1160 = vpop.xlane.xlu0 %1159
    %1161 = vadd.xlane.f32.xlu0 %v1130
    %v1162 = vpop.xlane.xlu0 %1161
    %1163 = vadd.xlane.f32.xlu0 %v1132
    %v1164 = vpop.xlane.xlu0 %1163
    %v1165 = vrcp.pop %v1134
    %v1166 = vrcp.pop %v1136
    %v1167 = vrcp.pop %v1138
    %v1168 = vrcp.pop %v1140
    %v1169 = vrcp.pop %v1142
    %v1170 = vrcp.pop %v1144
    %v1171 = vrcp.pop %v1146
    %v1172 = vrcp.pop %v1148
    %v1173 = vrcp.pop %v1150
    %v1174 = vrcp.pop %v1152
    %v1175 = vrcp.pop %v1154
    %v1176 = vrcp.pop %v1156
    %v1177 = vrcp.pop %v1158
    %v1178 = vrcp.pop %v1160
    %v1179 = vrcp.pop %v1162
    %v1180 = vrcp.pop %v1164
    %v1181 = vmul.f32 %v1102, %v1165
    %v1182 = vmul.f32 %v1104, %v1166
    %v1183 = vmul.f32 %v1106, %v1167
    %v1184 = vmul.f32 %v1108, %v1168
    %v1185 = vmul.f32 %v1110, %v1169
    %v1186 = vmul.f32 %v1112, %v1170
    %v1187 = vmul.f32 %v1114, %v1171
    %v1188 = vmul.f32 %v1116, %v1172
    %v1189 = vmul.f32 %v1118, %v1173
    %v1190 = vmul.f32 %v1120, %v1174
    %v1191 = vmul.f32 %v1122, %v1175
    %v1192 = vmul.f32 %v1124, %v1176
    %v1193 = vmul.f32 %v1126, %v1177
    %v1194 = vmul.f32 %v1128, %v1178
    %v1195 = vmul.f32 %v1130, %v1179
    %v1196 = vmul.f32 %v1132, %v1180
    %1197 = vmatprep.subr.mxu0 0.0
    %1198 = vmatpush1.msra.mxu0 %v282
    %1199 = vmatprep.subr.mxu0 0.0
    %1200 = vmatpush1.msra.mxu0 %v276
    %1201 = vmatprep.subr.mxu0 0.0
    %1202 = vmatpush1.msra.mxu0 %v270
    %1203 = vmatprep.subr.mxu0 0.0
    %1204 = vmatpush1.msra.mxu0 %v264
    %1205 = vmatprep.subr.mxu0 0.0
    %1206 = vmatpush1.msra.mxu0 %v258
    %1207 = vmatprep.subr.mxu0 0.0
    %1208 = vmatpush1.msra.mxu0 %v252
    %1209 = vmatprep.subr.mxu0 0.0
    %1210 = vmatpush1.msra.mxu0 %v246
    %1211 = vmatprep.subr.mxu0 0.0
    %1212 = vmatpush1.msra.mxu0 %v240
    %1213 = vmatprep.subr.mxu0 0.0
    %1214 = vmatpush1.msra.mxu0 %v234
    %1215 = vmatprep.subr.mxu0 0.0
    %1216 = vmatpush1.msra.mxu0 %v228
    %1217 = vmatprep.subr.mxu0 0.0
    %1218 = vmatpush1.msra.mxu0 %v222
    %1219 = vmatprep.subr.mxu0 0.0
    %1220 = vmatpush1.msra.mxu0 %v216
    %1221 = vmatprep.subr.mxu0 0.0
    %1222 = vmatpush1.msra.mxu0 %v210
    %1223 = vmatprep.subr.mxu0 0.0
    %1224 = vmatpush1.msra.mxu0 %v204
    %1225 = vmatprep.subr.mxu0 0.0
    %1226 = vmatpush1.msra.mxu0 %v198
    %1227 = vmatprep.subr.mxu0 0.0
    %1228 = vmatpush1.msra.mxu0 %v192
    %1229 = vmatprep.subr.mxu0 0.0
    %1230 = vmatpush2.msra.mxu0 0.0
    %1231 = vmatprep.subr.mxu0 0.0
    %1232 = vmatpush2.msra.mxu0 0.0
    %1233 = vmatprep.subr.mxu0 0.0
    %1234 = vmatpush2.msra.mxu0 0.0
    %1235 = vmatprep.subr.mxu0 0.0
    %1236 = vmatpush2.msra.mxu0 0.0
    %1237 = vmatprep.subr.mxu0 0.0
    %1238 = vmatpush2.msra.mxu0 0.0
    %1239 = vmatprep.subr.mxu0 0.0
    %1240 = vmatpush2.msra.mxu0 0.0
    %1241 = vmatprep.subr.mxu0 0.0
    %1242 = vmatpush2.msra.mxu0 0.0
    %1243 = vmatprep.subr.mxu0 0.0
    %1244 = vmatpush2.msra.mxu0 0.0
    %1245 = vmatprep.subr.mxu0 0.0
    %1246 = vmatpush2.msra.mxu0 0.0
    %1247 = vmatprep.subr.mxu0 0.0
    %1248 = vmatpush2.msra.mxu0 0.0
    %1249 = vmatprep.subr.mxu0 0.0
    %1250 = vmatpush2.msra.mxu0 0.0
    %1251 = vmatprep.subr.mxu0 0.0
    %1252 = vmatpush2.msra.mxu0 0.0
    %1253 = vmatprep.subr.mxu0 0.0
    %1254 = vmatpush2.msra.mxu0 0.0
    %1255 = vmatprep.subr.mxu0 0.0
    %1256 = vmatpush2.msra.mxu0 0.0
    %1257 = vmatprep.subr.mxu0 0.0
    %1258 = vmatpush2.msra.mxu0 0.0
    %1259 = vmatprep.subr.mxu0 0.0
    %1260 = vmatpush2.msra.mxu0 0.0
    %1261 = vmatprep.mubr.f32.mxu0 0.0
    %1262 = vmatmul.mubr.f32.gmra.mxu0 %v1181
    %v1263 = vpop.f32.mrf.mxu0
    %v1264 = vadd.f32 0.0, %v1263
    %v1265 = vpop.f32.mrf.mxu0
    %1266 = vmatprep.mubr.f32.mxu0 0.0
    %1267 = vmatmul.mubr.f32.gmra.mxu0 %v1182
    %v1268 = vpop.f32.mrf.mxu0
    %v1269 = vadd.f32 0.0, %v1268
    %v1270 = vpop.f32.mrf.mxu0
    %1271 = vmatprep.mubr.f32.mxu0 0.0
    %1272 = vmatmul.mubr.f32.gmra.mxu0 %v1183
    %v1273 = vpop.f32.mrf.mxu0
    %v1274 = vadd.f32 0.0, %v1273
    %v1275 = vpop.f32.mrf.mxu0
    %1276 = vmatprep.mubr.f32.mxu0 0.0
    %1277 = vmatmul.mubr.f32.gmra.mxu0 %v1184
    %v1278 = vpop.f32.mrf.mxu0
    %v1279 = vadd.f32 0.0, %v1278
    %v1280 = vpop.f32.mrf.mxu0
    %1281 = vmatprep.mubr.f32.mxu0 0.0
    %1282 = vmatmul.mubr.f32.gmra.mxu0 %v1185
    %v1283 = vpop.f32.mrf.mxu0
    %v1284 = vadd.f32 0.0, %v1283
    %v1285 = vpop.f32.mrf.mxu0
    %1286 = vmatprep.mubr.f32.mxu0 0.0
    %1287 = vmatmul.mubr.f32.gmra.mxu0 %v1186
    %v1288 = vpop.f32.mrf.mxu0
    %v1289 = vadd.f32 0.0, %v1288
    %v1290 = vpop.f32.mrf.mxu0
    %1291 = vmatprep.mubr.f32.mxu0 0.0
    %1292 = vmatmul.mubr.f32.gmra.mxu0 %v1187
    %v1293 = vpop.f32.mrf.mxu0
    %v1294 = vadd.f32 0.0, %v1293
    %v1295 = vpop.f32.mrf.mxu0
    %1296 = vmatprep.mubr.f32.mxu0 0.0
    %1297 = vmatmul.mubr.f32.gmra.mxu0 %v1188
    %v1298 = vpop.f32.mrf.mxu0
    %v1299 = vadd.f32 0.0, %v1298
    %v1300 = vpop.f32.mrf.mxu0
    %1301 = vmatprep.mubr.f32.mxu0 0.0
    %1302 = vmatmul.mubr.f32.gmra.mxu0 %v1189
    %v1303 = vpop.f32.mrf.mxu0
    %v1304 = vadd.f32 0.0, %v1303
    %v1305 = vpop.f32.mrf.mxu0
    %1306 = vmatprep.mubr.f32.mxu0 0.0
    %1307 = vmatmul.mubr.f32.gmra.mxu0 %v1190
    %v1308 = vpop.f32.mrf.mxu0
    %v1309 = vadd.f32 0.0, %v1308
    %v1310 = vpop.f32.mrf.mxu0
    %1311 = vmatprep.mubr.f32.mxu0 0.0
    %1312 = vmatmul.mubr.f32.gmra.mxu0 %v1191
    %v1313 = vpop.f32.mrf.mxu0
    %v1314 = vadd.f32 0.0, %v1313
    %v1315 = vpop.f32.mrf.mxu0
    %1316 = vmatprep.mubr.f32.mxu0 0.0
    %1317 = vmatmul.mubr.f32.gmra.mxu0 %v1192
    %v1318 = vpop.f32.mrf.mxu0
    %v1319 = vadd.f32 0.0, %v1318
    %v1320 = vpop.f32.mrf.mxu0
    %1321 = vmatprep.mubr.f32.mxu0 0.0
    %1322 = vmatmul.mubr.f32.gmra.mxu0 %v1193
    %v1323 = vpop.f32.mrf.mxu0
    %v1324 = vadd.f32 0.0, %v1323
    %v1325 = vpop.f32.mrf.mxu0
    %1326 = vmatprep.mubr.f32.mxu0 0.0
    %1327 = vmatmul.mubr.f32.gmra.mxu0 %v1194
    %v1328 = vpop.f32.mrf.mxu0
    %v1329 = vadd.f32 0.0, %v1328
    %v1330 = vpop.f32.mrf.mxu0
    %1331 = vmatprep.mubr.f32.mxu0 0.0
    %1332 = vmatmul.mubr.f32.gmra.mxu0 %v1195
    %v1333 = vpop.f32.mrf.mxu0
    %v1334 = vadd.f32 0.0, %v1333
    %v1335 = vpop.f32.mrf.mxu0
    %1336 = vmatprep.mubr.f32.mxu0 0.0
    %1337 = vmatmul.mubr.f32.gmra.mxu0 %v1196
    %v1338 = vpop.f32.mrf.mxu0
    %v1339 = vadd.f32 0.0, %v1338
    %v1340 = vpop.f32.mrf.mxu0
    %1341 = vdwg.mxu0
    %vm1342 = vcmp.gt.f32.partialorder %v1264, 0.0
    %vm1343 = vcmp.gt.f32.partialorder %v1269, 0.0
    %vm1344 = vcmp.gt.f32.partialorder %v1274, 0.0
    %vm1345 = vcmp.gt.f32.partialorder %v1279, 0.0
    %vm1346 = vcmp.gt.f32.partialorder %v1284, 0.0
    %vm1347 = vcmp.gt.f32.partialorder %v1289, 0.0
    %vm1348 = vcmp.gt.f32.partialorder %v1294, 0.0
    %vm1349 = vcmp.gt.f32.partialorder %v1299, 0.0
    %vm1350 = vcmp.gt.f32.partialorder %v1304, 0.0
    %vm1351 = vcmp.gt.f32.partialorder %v1309, 0.0
    %vm1352 = vcmp.gt.f32.partialorder %v1314, 0.0
    %vm1353 = vcmp.gt.f32.partialorder %v1319, 0.0
    %vm1354 = vcmp.gt.f32.partialorder %v1324, 0.0
    %vm1355 = vcmp.gt.f32.partialorder %v1329, 0.0
    %vm1356 = vcmp.gt.f32.partialorder %v1334, 0.0
    %vm1357 = vcmp.gt.f32.partialorder %v1339, 0.0
    %v1358 = vmul.f32 %v1264, 1.442695
    %v1359 = vpow.pop %v1358
    %v1360 = vmul.f32 %v1269, 1.442695
    %v1361 = vpow.pop %v1360
    %v1362 = vmul.f32 %v1274, 1.442695
    %v1363 = vpow.pop %v1362
    %v1364 = vmul.f32 %v1279, 1.442695
    %v1365 = vpow.pop %v1364
    %v1366 = vmul.f32 %v1284, 1.442695
    %v1367 = vpow.pop %v1366
    %v1368 = vmul.f32 %v1289, 1.442695
    %v1369 = vpow.pop %v1368
    %v1370 = vmul.f32 %v1294, 1.442695
    %v1371 = vpow.pop %v1370
    %v1372 = vmul.f32 %v1299, 1.442695
    %v1373 = vpow.pop %v1372
    %v1374 = vmul.f32 %v1304, 1.442695
    %v1375 = vpow.pop %v1374
    %v1376 = vmul.f32 %v1309, 1.442695
    %v1377 = vpow.pop %v1376
    %v1378 = vmul.f32 %v1314, 1.442695
    %v1379 = vpow.pop %v1378
    %v1380 = vmul.f32 %v1319, 1.442695
    %v1381 = vpow.pop %v1380
    %v1382 = vmul.f32 %v1324, 1.442695
    %v1383 = vpow.pop %v1382
    %v1384 = vmul.f32 %v1329, 1.442695
    %v1385 = vpow.pop %v1384
    %v1386 = vmul.f32 %v1334, 1.442695
    %v1387 = vpow.pop %v1386
    %v1388 = vmul.f32 %v1339, 1.442695
    %v1389 = vpow.pop %v1388
    %v1390 = vsub.f32 %v1359, 1.0
    %v1391 = vsub.f32 %v1361, 1.0
    %v1392 = vsub.f32 %v1363, 1.0
    %v1393 = vsub.f32 %v1365, 1.0
    %v1394 = vsub.f32 %v1367, 1.0
    %v1395 = vsub.f32 %v1369, 1.0
    %v1396 = vsub.f32 %v1371, 1.0
    %v1397 = vsub.f32 %v1373, 1.0
    %v1398 = vsub.f32 %v1375, 1.0
    %v1399 = vsub.f32 %v1377, 1.0
    %v1400 = vsub.f32 %v1379, 1.0
    %v1401 = vsub.f32 %v1381, 1.0
    %v1402 = vsub.f32 %v1383, 1.0
    %v1403 = vsub.f32 %v1385, 1.0
    %v1404 = vsub.f32 %v1387, 1.0
    %v1405 = vsub.f32 %v1389, 1.0
    %v1406 = vsel %vm1342, %v1264, %v1390
    %v1407 = vsel %vm1343, %v1269, %v1391
    %v1408 = vsel %vm1344, %v1274, %v1392
    %v1409 = vsel %vm1345, %v1279, %v1393
    %v1410 = vsel %vm1346, %v1284, %v1394
    %v1411 = vsel %vm1347, %v1289, %v1395
    %v1412 = vsel %vm1348, %v1294, %v1396
    %v1413 = vsel %vm1349, %v1299, %v1397
    %v1414 = vsel %vm1350, %v1304, %v1398
    %v1415 = vsel %vm1351, %v1309, %v1399
    %v1416 = vsel %vm1352, %v1314, %v1400
    %v1417 = vsel %vm1353, %v1319, %v1401
    %v1418 = vsel %vm1354, %v1324, %v1402
    %v1419 = vsel %vm1355, %v1329, %v1403
    %v1420 = vsel %vm1356, %v1334, %v1404
    %v1421 = vsel %vm1357, %v1339, %v1405
    %v1422 = vld [vmem:[%s5 + $0x80] sm:$0xff]
    %v1423 = vld [vmem:[%s5 + $0x88] sm:$0xff]
    %v1424 = vld [vmem:[%s5 + $0x90] sm:$0xff]
    %v1425 = vld [vmem:[%s5 + $0x98] sm:$0xff]
    %v1426 = vld [vmem:[%s5 + $0xa0] sm:$0xff]
    %v1427 = vld [vmem:[%s5 + $0xa8] sm:$0xff]
    %v1428 = vld [vmem:[%s5 + $0xb0] sm:$0xff]
    %v1429 = vld [vmem:[%s5 + $0xb8] sm:$0xff]
    %v1430 = vld [vmem:[%s5 + $0xc0] sm:$0xff]
    %v1431 = vld [vmem:[%s5 + $0xc8] sm:$0xff]
    %v1432 = vld [vmem:[%s5 + $0xd0] sm:$0xff]
    %v1433 = vld [vmem:[%s5 + $0xd8] sm:$0xff]
    %v1434 = vld [vmem:[%s5 + $0xe0] sm:$0xff]
    %v1435 = vld [vmem:[%s5 + $0xe8] sm:$0xff]
    %v1436 = vld [vmem:[%s5 + $0xf0] sm:$0xff]
    %v1437 = vld [vmem:[%s5 + $0xf8] sm:$0xff]
    %1438 = vmatprep.subr.mxu0 0.0
    %1439 = vmatpush1.msra.mxu0 %v1437
    %1440 = vmatprep.subr.mxu0 0.0
    %1441 = vmatpush1.msra.mxu0 %v1436
    %1442 = vmatprep.subr.mxu0 0.0
    %1443 = vmatpush1.msra.mxu0 %v1435
    %1444 = vmatprep.subr.mxu0 0.0
    %1445 = vmatpush1.msra.mxu0 %v1434
    %1446 = vmatprep.subr.mxu0 0.0
    %1447 = vmatpush1.msra.mxu0 %v1433
    %1448 = vmatprep.subr.mxu0 0.0
    %1449 = vmatpush1.msra.mxu0 %v1432
    %1450 = vmatprep.subr.mxu0 0.0
    %1451 = vmatpush1.msra.mxu0 %v1431
    %1452 = vmatprep.subr.mxu0 0.0
    %1453 = vmatpush1.msra.mxu0 %v1430
    %1454 = vmatprep.subr.mxu0 0.0
    %1455 = vmatpush1.msra.mxu0 %v1429
    %1456 = vmatprep.subr.mxu0 0.0
    %1457 = vmatpush1.msra.mxu0 %v1428
    %1458 = vmatprep.subr.mxu0 0.0
    %1459 = vmatpush1.msra.mxu0 %v1427
    %1460 = vmatprep.subr.mxu0 0.0
    %1461 = vmatpush1.msra.mxu0 %v1426
    %1462 = vmatprep.subr.mxu0 0.0
    %1463 = vmatpush1.msra.mxu0 %v1425
    %1464 = vmatprep.subr.mxu0 0.0
    %1465 = vmatpush1.msra.mxu0 %v1424
    %1466 = vmatprep.subr.mxu0 0.0
    %1467 = vmatpush1.msra.mxu0 %v1423
    %1468 = vmatprep.subr.mxu0 0.0
    %1469 = vmatpush1.msra.mxu0 %v1422
    %1470 = vmatprep.subr.mxu0 0.0
    %1471 = vmatpush2.msra.mxu0 0.0
    %1472 = vmatprep.subr.mxu0 0.0
    %1473 = vmatpush2.msra.mxu0 0.0
    %1474 = vmatprep.subr.mxu0 0.0
    %1475 = vmatpush2.msra.mxu0 0.0
    %1476 = vmatprep.subr.mxu0 0.0
    %1477 = vmatpush2.msra.mxu0 0.0
    %1478 = vmatprep.subr.mxu0 0.0
    %1479 = vmatpush2.msra.mxu0 0.0
    %1480 = vmatprep.subr.mxu0 0.0
    %1481 = vmatpush2.msra.mxu0 0.0
    %1482 = vmatprep.subr.mxu0 0.0
    %1483 = vmatpush2.msra.mxu0 0.0
    %1484 = vmatprep.subr.mxu0 0.0
    %1485 = vmatpush2.msra.mxu0 0.0
    %1486 = vmatprep.subr.mxu0 0.0
    %1487 = vmatpush2.msra.mxu0 0.0
    %1488 = vmatprep.subr.mxu0 0.0
    %1489 = vmatpush2.msra.mxu0 0.0
    %1490 = vmatprep.subr.mxu0 0.0
    %1491 = vmatpush2.msra.mxu0 0.0
    %1492 = vmatprep.subr.mxu0 0.0
    %1493 = vmatpush2.msra.mxu0 0.0
    %1494 = vmatprep.subr.mxu0 0.0
    %1495 = vmatpush2.msra.mxu0 0.0
    %1496 = vmatprep.subr.mxu0 0.0
    %1497 = vmatpush2.msra.mxu0 0.0
    %1498 = vmatprep.subr.mxu0 0.0
    %1499 = vmatpush2.msra.mxu0 0.0
    %1500 = vmatprep.subr.mxu0 0.0
    %1501 = vmatpush2.msra.mxu0 0.0
    %1502 = vmatprep.mubr.f32.mxu0 0.0
    %1503 = vmatmul.mubr.f32.gmra.mxu0 %v1406
    %v1504 = vpop.f32.mrf.mxu0
    %v1505 = vadd.f32 0.0, %v1504
    %v1506 = vpop.f32.mrf.mxu0
    %1507 = vmatprep.mubr.f32.mxu0 0.0
    %1508 = vmatmul.mubr.f32.gmra.mxu0 %v1407
    %v1509 = vpop.f32.mrf.mxu0
    %v1510 = vadd.f32 0.0, %v1509
    %v1511 = vpop.f32.mrf.mxu0
    %1512 = vmatprep.mubr.f32.mxu0 0.0
    %1513 = vmatmul.mubr.f32.gmra.mxu0 %v1408
    %v1514 = vpop.f32.mrf.mxu0
    %v1515 = vadd.f32 0.0, %v1514
    %v1516 = vpop.f32.mrf.mxu0
    %1517 = vmatprep.mubr.f32.mxu0 0.0
    %1518 = vmatmul.mubr.f32.gmra.mxu0 %v1409
    %v1519 = vpop.f32.mrf.mxu0
    %v1520 = vadd.f32 0.0, %v1519
    %v1521 = vpop.f32.mrf.mxu0
    %1522 = vmatprep.mubr.f32.mxu0 0.0
    %1523 = vmatmul.mubr.f32.gmra.mxu0 %v1410
    %v1524 = vpop.f32.mrf.mxu0
    %v1525 = vadd.f32 0.0, %v1524
    %v1526 = vpop.f32.mrf.mxu0
    %1527 = vmatprep.mubr.f32.mxu0 0.0
    %1528 = vmatmul.mubr.f32.gmra.mxu0 %v1411
    %v1529 = vpop.f32.mrf.mxu0
    %v1530 = vadd.f32 0.0, %v1529
    %v1531 = vpop.f32.mrf.mxu0
    %1532 = vmatprep.mubr.f32.mxu0 0.0
    %1533 = vmatmul.mubr.f32.gmra.mxu0 %v1412
    %v1534 = vpop.f32.mrf.mxu0
    %v1535 = vadd.f32 0.0, %v1534
    %v1536 = vpop.f32.mrf.mxu0
    %1537 = vmatprep.mubr.f32.mxu0 0.0
    %1538 = vmatmul.mubr.f32.gmra.mxu0 %v1413
    %v1539 = vpop.f32.mrf.mxu0
    %v1540 = vadd.f32 0.0, %v1539
    %v1541 = vpop.f32.mrf.mxu0
    %1542 = vmatprep.mubr.f32.mxu0 0.0
    %1543 = vmatmul.mubr.f32.gmra.mxu0 %v1414
    %v1544 = vpop.f32.mrf.mxu0
    %v1545 = vadd.f32 0.0, %v1544
    %v1546 = vpop.f32.mrf.mxu0
    %1547 = vmatprep.mubr.f32.mxu0 0.0
    %1548 = vmatmul.mubr.f32.gmra.mxu0 %v1415
    %v1549 = vpop.f32.mrf.mxu0
    %v1550 = vadd.f32 0.0, %v1549
    %v1551 = vpop.f32.mrf.mxu0
    %1552 = vmatprep.mubr.f32.mxu0 0.0
    %1553 = vmatmul.mubr.f32.gmra.mxu0 %v1416
    %v1554 = vpop.f32.mrf.mxu0
    %v1555 = vadd.f32 0.0, %v1554
    %v1556 = vpop.f32.mrf.mxu0
    %1557 = vmatprep.mubr.f32.mxu0 0.0
    %1558 = vmatmul.mubr.f32.gmra.mxu0 %v1417
    %v1559 = vpop.f32.mrf.mxu0
    %v1560 = vadd.f32 0.0, %v1559
    %v1561 = vpop.f32.mrf.mxu0
    %1562 = vmatprep.mubr.f32.mxu0 0.0
    %1563 = vmatmul.mubr.f32.gmra.mxu0 %v1418
    %v1564 = vpop.f32.mrf.mxu0
    %v1565 = vadd.f32 0.0, %v1564
    %v1566 = vpop.f32.mrf.mxu0
    %1567 = vmatprep.mubr.f32.mxu0 0.0
    %1568 = vmatmul.mubr.f32.gmra.mxu0 %v1419
    %v1569 = vpop.f32.mrf.mxu0
    %v1570 = vadd.f32 0.0, %v1569
    %v1571 = vpop.f32.mrf.mxu0
    %1572 = vmatprep.mubr.f32.mxu0 0.0
    %1573 = vmatmul.mubr.f32.gmra.mxu0 %v1420
    %v1574 = vpop.f32.mrf.mxu0
    %v1575 = vadd.f32 0.0, %v1574
    %v1576 = vpop.f32.mrf.mxu0
    %1577 = vmatprep.mubr.f32.mxu0 0.0
    %1578 = vmatmul.mubr.f32.gmra.mxu0 %v1421
    %v1579 = vpop.f32.mrf.mxu0
    %v1580 = vadd.f32 0.0, %v1579
    %v1581 = vpop.f32.mrf.mxu0
    %1582 = vdwg.mxu0
    %1583 = vmatprep.subr.mxu0 0.0
    %1584 = vmatpush1.msra.mxu0 %v860
    %1585 = vmatprep.subr.mxu0 0.0
    %1586 = vmatpush1.msra.mxu0 %v859
    %1587 = vmatprep.subr.mxu0 0.0
    %1588 = vmatpush1.msra.mxu0 %v858
    %1589 = vmatprep.subr.mxu0 0.0
    %1590 = vmatpush1.msra.mxu0 %v857
    %1591 = vmatprep.subr.mxu0 0.0
    %1592 = vmatpush1.msra.mxu0 %v856
    %1593 = vmatprep.subr.mxu0 0.0
    %1594 = vmatpush1.msra.mxu0 %v855
    %1595 = vmatprep.subr.mxu0 0.0
    %1596 = vmatpush1.msra.mxu0 %v854
    %1597 = vmatprep.subr.mxu0 0.0
    %1598 = vmatpush1.msra.mxu0 %v853
    %1599 = vmatprep.subr.mxu0 0.0
    %1600 = vmatpush1.msra.mxu0 %v852
    %1601 = vmatprep.subr.mxu0 0.0
    %1602 = vmatpush1.msra.mxu0 %v851
    %1603 = vmatprep.subr.mxu0 0.0
    %1604 = vmatpush1.msra.mxu0 %v850
    %1605 = vmatprep.subr.mxu0 0.0
    %1606 = vmatpush1.msra.mxu0 %v849
    %1607 = vmatprep.subr.mxu0 0.0
    %1608 = vmatpush1.msra.mxu0 %v848
    %1609 = vmatprep.subr.mxu0 0.0
    %1610 = vmatpush1.msra.mxu0 %v847
    %1611 = vmatprep.subr.mxu0 0.0
    %1612 = vmatpush1.msra.mxu0 %v846
    %1613 = vmatprep.subr.mxu0 0.0
    %1614 = vmatpush1.msra.mxu0 %v845
    %1615 = vmatprep.subr.mxu0 0.0
    %1616 = vmatpush2.msra.mxu0 0.0
    %1617 = vmatprep.subr.mxu0 0.0
    %1618 = vmatpush2.msra.mxu0 0.0
    %1619 = vmatprep.subr.mxu0 0.0
    %1620 = vmatpush2.msra.mxu0 0.0
    %1621 = vmatprep.subr.mxu0 0.0
    %1622 = vmatpush2.msra.mxu0 0.0
    %1623 = vmatprep.subr.mxu0 0.0
    %1624 = vmatpush2.msra.mxu0 0.0
    %1625 = vmatprep.subr.mxu0 0.0
    %1626 = vmatpush2.msra.mxu0 0.0
    %1627 = vmatprep.subr.mxu0 0.0
    %1628 = vmatpush2.msra.mxu0 0.0
    %1629 = vmatprep.subr.mxu0 0.0
    %1630 = vmatpush2.msra.mxu0 0.0
    %1631 = vmatprep.subr.mxu0 0.0
    %1632 = vmatpush2.msra.mxu0 0.0
    %1633 = vmatprep.subr.mxu0 0.0
    %1634 = vmatpush2.msra.mxu0 0.0
    %1635 = vmatprep.subr.mxu0 0.0
    %1636 = vmatpush2.msra.mxu0 0.0
    %1637 = vmatprep.subr.mxu0 0.0
    %1638 = vmatpush2.msra.mxu0 0.0
    %1639 = vmatprep.subr.mxu0 0.0
    %1640 = vmatpush2.msra.mxu0 0.0
    %1641 = vmatprep.subr.mxu0 0.0
    %1642 = vmatpush2.msra.mxu0 0.0
    %1643 = vmatprep.subr.mxu0 0.0
    %1644 = vmatpush2.msra.mxu0 0.0
    %1645 = vmatprep.subr.mxu0 0.0
    %1646 = vmatpush2.msra.mxu0 0.0
    %1647 = vmatprep.mubr.f32.mxu0 0.0
    %1648 = vmatmul.mubr.f32.gmra.mxu0 %v829
    %v1649 = vpop.f32.mrf.mxu0
    %v1650 = vadd.f32 %v1505, %v1649
    %v1651 = vpop.f32.mrf.mxu0
    %1652 = vmatprep.mubr.f32.mxu0 0.0
    %1653 = vmatmul.mubr.f32.gmra.mxu0 %v830
    %v1654 = vpop.f32.mrf.mxu0
    %v1655 = vadd.f32 %v1510, %v1654
    %v1656 = vpop.f32.mrf.mxu0
    %1657 = vmatprep.mubr.f32.mxu0 0.0
    %1658 = vmatmul.mubr.f32.gmra.mxu0 %v831
    %v1659 = vpop.f32.mrf.mxu0
    %v1660 = vadd.f32 %v1515, %v1659
    %v1661 = vpop.f32.mrf.mxu0
    %1662 = vmatprep.mubr.f32.mxu0 0.0
    %1663 = vmatmul.mubr.f32.gmra.mxu0 %v832
    %v1664 = vpop.f32.mrf.mxu0
    %v1665 = vadd.f32 %v1520, %v1664
    %v1666 = vpop.f32.mrf.mxu0
    %1667 = vmatprep.mubr.f32.mxu0 0.0
    %1668 = vmatmul.mubr.f32.gmra.mxu0 %v833
    %v1669 = vpop.f32.mrf.mxu0
    %v1670 = vadd.f32 %v1525, %v1669
    %v1671 = vpop.f32.mrf.mxu0
    %1672 = vmatprep.mubr.f32.mxu0 0.0
    %1673 = vmatmul.mubr.f32.gmra.mxu0 %v834
    %v1674 = vpop.f32.mrf.mxu0
    %v1675 = vadd.f32 %v1530, %v1674
    %v1676 = vpop.f32.mrf.mxu0
    %1677 = vmatprep.mubr.f32.mxu0 0.0
    %1678 = vmatmul.mubr.f32.gmra.mxu0 %v835
    %v1679 = vpop.f32.mrf.mxu0
    %v1680 = vadd.f32 %v1535, %v1679
    %v1681 = vpop.f32.mrf.mxu0
    %1682 = vmatprep.mubr.f32.mxu0 0.0
    %1683 = vmatmul.mubr.f32.gmra.mxu0 %v836
    %v1684 = vpop.f32.mrf.mxu0
    %v1685 = vadd.f32 %v1540, %v1684
    %v1686 = vpop.f32.mrf.mxu0
    %1687 = vmatprep.mubr.f32.mxu0 0.0
    %1688 = vmatmul.mubr.f32.gmra.mxu0 %v837
    %v1689 = vpop.f32.mrf.mxu0
    %v1690 = vadd.f32 %v1545, %v1689
    %v1691 = vpop.f32.mrf.mxu0
    %1692 = vmatprep.mubr.f32.mxu0 0.0
    %1693 = vmatmul.mubr.f32.gmra.mxu0 %v838
    %v1694 = vpop.f32.mrf.mxu0
    %v1695 = vadd.f32 %v1550, %v1694
    %v1696 = vpop.f32.mrf.mxu0
    %1697 = vmatprep.mubr.f32.mxu0 0.0
    %1698 = vmatmul.mubr.f32.gmra.mxu0 %v839
    %v1699 = vpop.f32.mrf.mxu0
    %v1700 = vadd.f32 %v1555, %v1699
    %v1701 = vpop.f32.mrf.mxu0
    %1702 = vmatprep.mubr.f32.mxu0 0.0
    %1703 = vmatmul.mubr.f32.gmra.mxu0 %v840
    %v1704 = vpop.f32.mrf.mxu0
    %v1705 = vadd.f32 %v1560, %v1704
    %v1706 = vpop.f32.mrf.mxu0
    %1707 = vmatprep.mubr.f32.mxu0 0.0
    %1708 = vmatmul.mubr.f32.gmra.mxu0 %v841
    %v1709 = vpop.f32.mrf.mxu0
    %v1710 = vadd.f32 %v1565, %v1709
    %v1711 = vpop.f32.mrf.mxu0
    %1712 = vmatprep.mubr.f32.mxu0 0.0
    %1713 = vmatmul.mubr.f32.gmra.mxu0 %v842
    %v1714 = vpop.f32.mrf.mxu0
    %v1715 = vadd.f32 %v1570, %v1714
    %v1716 = vpop.f32.mrf.mxu0
    %1717 = vmatprep.mubr.f32.mxu0 0.0
    %1718 = vmatmul.mubr.f32.gmra.mxu0 %v843
    %v1719 = vpop.f32.mrf.mxu0
    %v1720 = vadd.f32 %v1575, %v1719
    %v1721 = vpop.f32.mrf.mxu0
    %1722 = vmatprep.mubr.f32.mxu0 0.0
    %1723 = vmatmul.mubr.f32.gmra.mxu0 %v844
    %v1724 = vpop.f32.mrf.mxu0
    %v1725 = vadd.f32 %v1580, %v1724
    %v1726 = vpop.f32.mrf.mxu0
    %1727 = vdwg.mxu0
    %v1728 = vld [vmem:[%s6] sm:$0x1]
    %v1729 = vld [vmem:[%s7] sm:$0x1]
    %v1731 = vlaneseq
    %v1732 = vshrl.u32 %v1731, 7
    %v1733 = vsub.s32 0, %v1732
    %v1734 = vrot.slane %v1728, %v1733
    %v1736 = vmul.f32 %v1650, %v1734
    %v1737 = vmul.f32 %v1655, %v1734
    %v1738 = vmul.f32 %v1660, %v1734
    %v1739 = vmul.f32 %v1665, %v1734
    %v1740 = vmul.f32 %v1670, %v1734
    %v1741 = vmul.f32 %v1675, %v1734
    %v1742 = vmul.f32 %v1680, %v1734
    %v1743 = vmul.f32 %v1685, %v1734
    %v1744 = vmul.f32 %v1690, %v1734
    %v1745 = vmul.f32 %v1695, %v1734
    %v1746 = vmul.f32 %v1700, %v1734
    %v1747 = vmul.f32 %v1705, %v1734
    %v1748 = vmul.f32 %v1710, %v1734
    %v1749 = vmul.f32 %v1715, %v1734
    %v1750 = vmul.f32 %v1720, %v1734
    %v1751 = vmul.f32 %v1725, %v1734
    %vm1752 = vcmask 130048
    %v1753 = vsel %vm1752, %v1736, 0.0
    %1754 = vadd.xlane.f32.xlu0 %v1753
    %v1755 = vpop.xlane.xlu0 %1754
    %v1756 = vsel %vm1752, %v1737, 0.0
    %1757 = vadd.xlane.f32.xlu0 %v1756
    %v1758 = vpop.xlane.xlu0 %1757
    %v1759 = vsel %vm1752, %v1738, 0.0
    %1760 = vadd.xlane.f32.xlu0 %v1759
    %v1761 = vpop.xlane.xlu0 %1760
    %v1762 = vsel %vm1752, %v1739, 0.0
    %1763 = vadd.xlane.f32.xlu0 %v1762
    %v1764 = vpop.xlane.xlu0 %1763
    %v1765 = vsel %vm1752, %v1740, 0.0
    %1766 = vadd.xlane.f32.xlu0 %v1765
    %v1767 = vpop.xlane.xlu0 %1766
    %v1768 = vsel %vm1752, %v1741, 0.0
    %1769 = vadd.xlane.f32.xlu0 %v1768
    %v1770 = vpop.xlane.xlu0 %1769
    %v1771 = vsel %vm1752, %v1742, 0.0
    %1772 = vadd.xlane.f32.xlu0 %v1771
    %v1773 = vpop.xlane.xlu0 %1772
    %v1774 = vsel %vm1752, %v1743, 0.0
    %1775 = vadd.xlane.f32.xlu0 %v1774
    %v1776 = vpop.xlane.xlu0 %1775
    %v1777 = vsel %vm1752, %v1744, 0.0
    %1778 = vadd.xlane.f32.xlu0 %v1777
    %v1779 = vpop.xlane.xlu0 %1778
    %v1780 = vsel %vm1752, %v1745, 0.0
    %1781 = vadd.xlane.f32.xlu0 %v1780
    %v1782 = vpop.xlane.xlu0 %1781
    %v1783 = vsel %vm1752, %v1746, 0.0
    %1784 = vadd.xlane.f32.xlu0 %v1783
    %v1785 = vpop.xlane.xlu0 %1784
    %v1786 = vsel %vm1752, %v1747, 0.0
    %1787 = vadd.xlane.f32.xlu0 %v1786
    %v1788 = vpop.xlane.xlu0 %1787
    %v1789 = vsel %vm1752, %v1748, 0.0
    %1790 = vadd.xlane.f32.xlu0 %v1789
    %v1791 = vpop.xlane.xlu0 %1790
    %v1792 = vsel %vm1752, %v1749, 0.0
    %1793 = vadd.xlane.f32.xlu0 %v1792
    %v1794 = vpop.xlane.xlu0 %1793
    %v1795 = vsel %vm1752, %v1750, 0.0
    %1796 = vadd.xlane.f32.xlu0 %v1795
    %v1797 = vpop.xlane.xlu0 %1796
    %v1798 = vsel %vm1752, %v1751, 0.0
    %1799 = vadd.xlane.f32.xlu0 %v1798
    %v1800 = vpop.xlane.xlu0 %1799
    %v1802 = vsel %vm1752, %v1729, 0
    %v1805 = vsel %vm1752, %v1650, 0
    %v1808 = vsel %vm1752, %v1655, 0
    %v1811 = vsel %vm1752, %v1660, 0
    %v1814 = vsel %vm1752, %v1665, 0
    %v1817 = vsel %vm1752, %v1670, 0
    %v1820 = vsel %vm1752, %v1675, 0
    %v1823 = vsel %vm1752, %v1680, 0
    %v1826 = vsel %vm1752, %v1685, 0
    %v1829 = vsel %vm1752, %v1690, 0
    %v1832 = vsel %vm1752, %v1695, 0
    %v1835 = vsel %vm1752, %v1700, 0
    %v1838 = vsel %vm1752, %v1705, 0
    %v1841 = vsel %vm1752, %v1710, 0
    %v1844 = vsel %vm1752, %v1715, 0
    %v1847 = vsel %vm1752, %v1720, 0
    %v1850 = vsel %vm1752, %v1725, 0
    %1852 = vmatprep.subr.mxu0 0.0
    %1853 = vmatpush1.xpose.msra.mxu0 %v1850
    %1854 = vmatprep.subr.mxu0 0.0
    %1855 = vmatpush1.xpose.msra.mxu0 %v1847
    %1856 = vmatprep.subr.mxu0 0.0
    %1857 = vmatpush1.xpose.msra.mxu0 %v1844
    %1858 = vmatprep.subr.mxu0 0.0
    %1859 = vmatpush1.xpose.msra.mxu0 %v1841
    %1860 = vmatprep.subr.mxu0 0.0
    %1861 = vmatpush1.xpose.msra.mxu0 %v1838
    %1862 = vmatprep.subr.mxu0 0.0
    %1863 = vmatpush1.xpose.msra.mxu0 %v1835
    %1864 = vmatprep.subr.mxu0 0.0
    %1865 = vmatpush1.xpose.msra.mxu0 %v1832
    %1866 = vmatprep.subr.mxu0 0.0
    %1867 = vmatpush1.xpose.msra.mxu0 %v1829
    %1868 = vmatprep.subr.mxu0 0.0
    %1869 = vmatpush1.xpose.msra.mxu0 %v1826
    %1870 = vmatprep.subr.mxu0 0.0
    %1871 = vmatpush1.xpose.msra.mxu0 %v1823
    %1872 = vmatprep.subr.mxu0 0.0
    %1873 = vmatpush1.xpose.msra.mxu0 %v1820
    %1874 = vmatprep.subr.mxu0 0.0
    %1875 = vmatpush1.xpose.msra.mxu0 %v1817
    %1876 = vmatprep.subr.mxu0 0.0
    %1877 = vmatpush1.xpose.msra.mxu0 %v1814
    %1878 = vmatprep.subr.mxu0 0.0
    %1879 = vmatpush1.xpose.msra.mxu0 %v1811
    %1880 = vmatprep.subr.mxu0 0.0
    %1881 = vmatpush1.xpose.msra.mxu0 %v1808
    %1882 = vmatprep.subr.mxu0 0.0
    %1883 = vmatpush1.xpose.msra.mxu0 %v1805
    %1884 = vmatprep.subr.mxu0 0.0
    %1885 = vmatpush2.xpose.msra.mxu0 0.0
    %1886 = vmatprep.subr.mxu0 0.0
    %1887 = vmatpush2.xpose.msra.mxu0 0.0
    %1888 = vmatprep.subr.mxu0 0.0
    %1889 = vmatpush2.xpose.msra.mxu0 0.0
    %1890 = vmatprep.subr.mxu0 0.0
    %1891 = vmatpush2.xpose.msra.mxu0 0.0
    %1892 = vmatprep.subr.mxu0 0.0
    %1893 = vmatpush2.xpose.msra.mxu0 0.0
    %1894 = vmatprep.subr.mxu0 0.0
    %1895 = vmatpush2.xpose.msra.mxu0 0.0
    %1896 = vmatprep.subr.mxu0 0.0
    %1897 = vmatpush2.xpose.msra.mxu0 0.0
    %1898 = vmatprep.subr.mxu0 0.0
    %1899 = vmatpush2.xpose.msra.mxu0 0.0
    %1900 = vmatprep.subr.mxu0 0.0
    %1901 = vmatpush2.xpose.msra.mxu0 0.0
    %1902 = vmatprep.subr.mxu0 0.0
    %1903 = vmatpush2.xpose.msra.mxu0 0.0
    %1904 = vmatprep.subr.mxu0 0.0
    %1905 = vmatpush2.xpose.msra.mxu0 0.0
    %1906 = vmatprep.subr.mxu0 0.0
    %1907 = vmatpush2.xpose.msra.mxu0 0.0
    %1908 = vmatprep.subr.mxu0 0.0
    %1909 = vmatpush2.xpose.msra.mxu0 0.0
    %1910 = vmatprep.subr.mxu0 0.0
    %1911 = vmatpush2.xpose.msra.mxu0 0.0
    %1912 = vmatprep.subr.mxu0 0.0
    %1913 = vmatpush2.xpose.msra.mxu0 0.0
    %1914 = vmatprep.subr.mxu0 0.0
    %1915 = vmatpush2.xpose.msra.mxu0 0.0
    %1916 = vmatprep.mubr.f32.mxu0 0.0
    %1917 = vmatmul.mubr.f32.gmra.mxu0 %v1802
    %v1918 = vpop.f32.mrf.mxu0
    %v1919 = vadd.f32 0.0, %v1918
    %v1920 = vpop.f32.mrf.mxu0
    %1921 = vdwg.mxu0
    %v1922 = vlaneseq
    %v1923 = vshrl.u32 %v1922, 7
    %v1924 = vsub.s32 0, %v1923
    %v1925 = vrot.slane %v1919, %v1924
    %v1926 = vadd.f32 %v1755, %v1925
    %v1927 = vadd.f32 %v1758, %v1925
    %v1928 = vadd.f32 %v1761, %v1925
    %v1929 = vadd.f32 %v1764, %v1925
    %v1930 = vadd.f32 %v1767, %v1925
    %v1931 = vadd.f32 %v1770, %v1925
    %v1932 = vadd.f32 %v1773, %v1925
    %v1933 = vadd.f32 %v1776, %v1925
    %v1934 = vadd.f32 %v1779, %v1925
    %v1935 = vadd.f32 %v1782, %v1925
    %v1936 = vadd.f32 %v1785, %v1925
    %v1937 = vadd.f32 %v1788, %v1925
    %v1938 = vadd.f32 %v1791, %v1925
    %v1939 = vadd.f32 %v1794, %v1925
    %v1940 = vadd.f32 %v1797, %v1925
    %v1941 = vadd.f32 %v1800, %v1925
    %v1942 = vmul.f32 %v1926, 0.2
    %v1943 = vmul.f32 %v1927, 0.2
    %v1944 = vmul.f32 %v1928, 0.2
    %v1945 = vmul.f32 %v1929, 0.2
    %v1946 = vmul.f32 %v1930, 0.2
    %v1947 = vmul.f32 %v1931, 0.2
    %v1948 = vmul.f32 %v1932, 0.2
    %v1949 = vmul.f32 %v1933, 0.2
    %v1950 = vmul.f32 %v1934, 0.2
    %v1951 = vmul.f32 %v1935, 0.2
    %v1952 = vmul.f32 %v1936, 0.2
    %v1953 = vmul.f32 %v1937, 0.2
    %v1954 = vmul.f32 %v1938, 0.2
    %v1955 = vmul.f32 %v1939, 0.2
    %v1956 = vmul.f32 %v1940, 0.2
    %v1957 = vmul.f32 %v1941, 0.2
    %v1958 = vmax.f32 %v1926, %v1942
    %v1959 = vmax.f32 %v1927, %v1943
    %v1960 = vmax.f32 %v1928, %v1944
    %v1961 = vmax.f32 %v1929, %v1945
    %v1962 = vmax.f32 %v1930, %v1946
    %v1963 = vmax.f32 %v1931, %v1947
    %v1964 = vmax.f32 %v1932, %v1948
    %v1965 = vmax.f32 %v1933, %v1949
    %v1966 = vmax.f32 %v1934, %v1950
    %v1967 = vmax.f32 %v1935, %v1951
    %v1968 = vmax.f32 %v1936, %v1952
    %v1969 = vmax.f32 %v1937, %v1953
    %v1970 = vmax.f32 %v1938, %v1954
    %v1971 = vmax.f32 %v1939, %v1955
    %v1972 = vmax.f32 %v1940, %v1956
    %v1973 = vmax.f32 %v1941, %v1957
    %v1974 = vadd.f32 %v1958, %v34
    %v1975 = vadd.f32 %v1959, %v35
    %v1976 = vadd.f32 %v1960, %v36
    %v1977 = vadd.f32 %v1961, %v37
    %v1978 = vadd.f32 %v1962, %v38
    %v1979 = vadd.f32 %v1963, %v39
    %v1980 = vadd.f32 %v1964, %v40
    %v1981 = vadd.f32 %v1965, %v41
    %v1982 = vadd.f32 %v1966, %v42
    %v1983 = vadd.f32 %v1967, %v43
    %v1984 = vadd.f32 %v1968, %v44
    %v1985 = vadd.f32 %v1969, %v45
    %v1986 = vadd.f32 %v1970, %v46
    %v1987 = vadd.f32 %v1971, %v47
    %v1988 = vadd.f32 %v1972, %v48
    %v1989 = vadd.f32 %v1973, %v49
    %1990 = vmax.xlane.f32.xlu0 %v1974
    %v1991 = vpop.xlane.xlu0 %1990
    %1992 = vmax.xlane.f32.xlu0 %v1975
    %v1993 = vpop.xlane.xlu0 %1992
    %1994 = vmax.xlane.f32.xlu0 %v1976
    %v1995 = vpop.xlane.xlu0 %1994
    %1996 = vmax.xlane.f32.xlu0 %v1977
    %v1997 = vpop.xlane.xlu0 %1996
    %1998 = vmax.xlane.f32.xlu0 %v1978
    %v1999 = vpop.xlane.xlu0 %1998
    %2000 = vmax.xlane.f32.xlu0 %v1979
    %v2001 = vpop.xlane.xlu0 %2000
    %2002 = vmax.xlane.f32.xlu0 %v1980
    %v2003 = vpop.xlane.xlu0 %2002
    %2004 = vmax.xlane.f32.xlu0 %v1981
    %v2005 = vpop.xlane.xlu0 %2004
    %2006 = vmax.xlane.f32.xlu0 %v1982
    %v2007 = vpop.xlane.xlu0 %2006
    %2008 = vmax.xlane.f32.xlu0 %v1983
    %v2009 = vpop.xlane.xlu0 %2008
    %2010 = vmax.xlane.f32.xlu0 %v1984
    %v2011 = vpop.xlane.xlu0 %2010
    %2012 = vmax.xlane.f32.xlu0 %v1985
    %v2013 = vpop.xlane.xlu0 %2012
    %2014 = vmax.xlane.f32.xlu0 %v1986
    %v2015 = vpop.xlane.xlu0 %2014
    %2016 = vmax.xlane.f32.xlu0 %v1987
    %v2017 = vpop.xlane.xlu0 %2016
    %2018 = vmax.xlane.f32.xlu0 %v1988
    %v2019 = vpop.xlane.xlu0 %2018
    %2020 = vmax.xlane.f32.xlu0 %v1989
    %v2021 = vpop.xlane.xlu0 %2020
    %v2022 = vsub.f32 %v1974, %v1991
    %v2023 = vsub.f32 %v1975, %v1993
    %v2024 = vsub.f32 %v1976, %v1995
    %v2025 = vsub.f32 %v1977, %v1997
    %v2026 = vsub.f32 %v1978, %v1999
    %v2027 = vsub.f32 %v1979, %v2001
    %v2028 = vsub.f32 %v1980, %v2003
    %v2029 = vsub.f32 %v1981, %v2005
    %v2030 = vsub.f32 %v1982, %v2007
    %v2031 = vsub.f32 %v1983, %v2009
    %v2032 = vsub.f32 %v1984, %v2011
    %v2033 = vsub.f32 %v1985, %v2013
    %v2034 = vsub.f32 %v1986, %v2015
    %v2035 = vsub.f32 %v1987, %v2017
    %v2036 = vsub.f32 %v1988, %v2019
    %v2037 = vsub.f32 %v1989, %v2021
    %v2038 = vmul.f32 %v2022, 1.442695
    %v2039 = vpow.pop %v2038
    %v2040 = vmul.f32 %v2023, 1.442695
    %v2041 = vpow.pop %v2040
    %v2042 = vmul.f32 %v2024, 1.442695
    %v2043 = vpow.pop %v2042
    %v2044 = vmul.f32 %v2025, 1.442695
    %v2045 = vpow.pop %v2044
    %v2046 = vmul.f32 %v2026, 1.442695
    %v2047 = vpow.pop %v2046
    %v2048 = vmul.f32 %v2027, 1.442695
    %v2049 = vpow.pop %v2048
    %v2050 = vmul.f32 %v2028, 1.442695
    %v2051 = vpow.pop %v2050
    %v2052 = vmul.f32 %v2029, 1.442695
    %v2053 = vpow.pop %v2052
    %v2054 = vmul.f32 %v2030, 1.442695
    %v2055 = vpow.pop %v2054
    %v2056 = vmul.f32 %v2031, 1.442695
    %v2057 = vpow.pop %v2056
    %v2058 = vmul.f32 %v2032, 1.442695
    %v2059 = vpow.pop %v2058
    %v2060 = vmul.f32 %v2033, 1.442695
    %v2061 = vpow.pop %v2060
    %v2062 = vmul.f32 %v2034, 1.442695
    %v2063 = vpow.pop %v2062
    %v2064 = vmul.f32 %v2035, 1.442695
    %v2065 = vpow.pop %v2064
    %v2066 = vmul.f32 %v2036, 1.442695
    %v2067 = vpow.pop %v2066
    %v2068 = vmul.f32 %v2037, 1.442695
    %v2069 = vpow.pop %v2068
    %2070 = vadd.xlane.f32.xlu0 %v2039
    %v2071 = vpop.xlane.xlu0 %2070
    %2072 = vadd.xlane.f32.xlu0 %v2041
    %v2073 = vpop.xlane.xlu0 %2072
    %2074 = vadd.xlane.f32.xlu0 %v2043
    %v2075 = vpop.xlane.xlu0 %2074
    %2076 = vadd.xlane.f32.xlu0 %v2045
    %v2077 = vpop.xlane.xlu0 %2076
    %2078 = vadd.xlane.f32.xlu0 %v2047
    %v2079 = vpop.xlane.xlu0 %2078
    %2080 = vadd.xlane.f32.xlu0 %v2049
    %v2081 = vpop.xlane.xlu0 %2080
    %2082 = vadd.xlane.f32.xlu0 %v2051
    %v2083 = vpop.xlane.xlu0 %2082
    %2084 = vadd.xlane.f32.xlu0 %v2053
    %v2085 = vpop.xlane.xlu0 %2084
    %2086 = vadd.xlane.f32.xlu0 %v2055
    %v2087 = vpop.xlane.xlu0 %2086
    %2088 = vadd.xlane.f32.xlu0 %v2057
    %v2089 = vpop.xlane.xlu0 %2088
    %2090 = vadd.xlane.f32.xlu0 %v2059
    %v2091 = vpop.xlane.xlu0 %2090
    %2092 = vadd.xlane.f32.xlu0 %v2061
    %v2093 = vpop.xlane.xlu0 %2092
    %2094 = vadd.xlane.f32.xlu0 %v2063
    %v2095 = vpop.xlane.xlu0 %2094
    %2096 = vadd.xlane.f32.xlu0 %v2065
    %v2097 = vpop.xlane.xlu0 %2096
    %2098 = vadd.xlane.f32.xlu0 %v2067
    %v2099 = vpop.xlane.xlu0 %2098
    %2100 = vadd.xlane.f32.xlu0 %v2069
    %v2101 = vpop.xlane.xlu0 %2100
    %v2102 = vrcp.pop %v2071
    %v2103 = vrcp.pop %v2073
    %v2104 = vrcp.pop %v2075
    %v2105 = vrcp.pop %v2077
    %v2106 = vrcp.pop %v2079
    %v2107 = vrcp.pop %v2081
    %v2108 = vrcp.pop %v2083
    %v2109 = vrcp.pop %v2085
    %v2110 = vrcp.pop %v2087
    %v2111 = vrcp.pop %v2089
    %v2112 = vrcp.pop %v2091
    %v2113 = vrcp.pop %v2093
    %v2114 = vrcp.pop %v2095
    %v2115 = vrcp.pop %v2097
    %v2116 = vrcp.pop %v2099
    %v2117 = vrcp.pop %v2101
    %v2118 = vmul.f32 %v2039, %v2102
    %v2119 = vmul.f32 %v2041, %v2103
    %v2120 = vmul.f32 %v2043, %v2104
    %v2121 = vmul.f32 %v2045, %v2105
    %v2122 = vmul.f32 %v2047, %v2106
    %v2123 = vmul.f32 %v2049, %v2107
    %v2124 = vmul.f32 %v2051, %v2108
    %v2125 = vmul.f32 %v2053, %v2109
    %v2126 = vmul.f32 %v2055, %v2110
    %v2127 = vmul.f32 %v2057, %v2111
    %v2128 = vmul.f32 %v2059, %v2112
    %v2129 = vmul.f32 %v2061, %v2113
    %v2130 = vmul.f32 %v2063, %v2114
    %v2131 = vmul.f32 %v2065, %v2115
    %v2132 = vmul.f32 %v2067, %v2116
    %v2133 = vmul.f32 %v2069, %v2117
    %v2134 = vpack.c.bf16 %v2119, %v2118
    %v2135 = vpack.c.bf16 %v2121, %v2120
    %v2136 = vpack.c.bf16 %v2123, %v2122
    %v2137 = vpack.c.bf16 %v2125, %v2124
    %v2138 = vpack.c.bf16 %v2127, %v2126
    %v2139 = vpack.c.bf16 %v2129, %v2128
    %v2140 = vpack.c.bf16 %v2131, %v2130
    %v2141 = vpack.c.bf16 %v2133, %v2132
    %v2142 = vpack.c.bf16 %v1655, %v1650
    %v2143 = vpack.c.bf16 %v1665, %v1660
    %v2144 = vpack.c.bf16 %v1675, %v1670
    %v2145 = vpack.c.bf16 %v1685, %v1680
    %v2146 = vpack.c.bf16 %v1695, %v1690
    %v2147 = vpack.c.bf16 %v1705, %v1700
    %v2148 = vpack.c.bf16 %v1715, %v1710
    %v2149 = vpack.c.bf16 %v1725, %v1720
    %2150 = vmatprep.subr.bf16.mxu0 0
    %2151 = vmatpush1.bf16.msra.mxu0 %v2149
    %2152 = vmatprep.subr.bf16.mxu0 0
    %2153 = vmatpush1.bf16.msra.mxu0 %v2148
    %2154 = vmatprep.subr.bf16.mxu0 0
    %2155 = vmatpush1.bf16.msra.mxu0 %v2147
    %2156 = vmatprep.subr.bf16.mxu0 0
    %2157 = vmatpush1.bf16.msra.mxu0 %v2146
    %2158 = vmatprep.subr.bf16.mxu0 0
    %2159 = vmatpush1.bf16.msra.mxu0 %v2145
    %2160 = vmatprep.subr.bf16.mxu0 0
    %2161 = vmatpush1.bf16.msra.mxu0 %v2144
    %2162 = vmatprep.subr.bf16.mxu0 0
    %2163 = vmatpush1.bf16.msra.mxu0 %v2143
    %2164 = vmatprep.subr.bf16.mxu0 0
    %2165 = vmatpush1.bf16.msra.mxu0 %v2142
    %2166 = vmatprep.subr.bf16.mxu0 0
    %2167 = vmatpush2.bf16.msra.mxu0 0
    %2168 = vmatprep.subr.bf16.mxu0 0
    %2169 = vmatpush2.bf16.msra.mxu0 0
    %2170 = vmatprep.subr.bf16.mxu0 0
    %2171 = vmatpush2.bf16.msra.mxu0 0
    %2172 = vmatprep.subr.bf16.mxu0 0
    %2173 = vmatpush2.bf16.msra.mxu0 0
    %2174 = vmatprep.subr.bf16.mxu0 0
    %2175 = vmatpush2.bf16.msra.mxu0 0
    %2176 = vmatprep.subr.bf16.mxu0 0
    %2177 = vmatpush2.bf16.msra.mxu0 0
    %2178 = vmatprep.subr.bf16.mxu0 0
    %2179 = vmatpush2.bf16.msra.mxu0 0
    %2180 = vmatprep.subr.bf16.mxu0 0
    %2181 = vmatpush2.bf16.msra.mxu0 0
    %2182 = vmatprep.mubr.bf16.mxu0 0
    %2183 = vmatmul.mubr.bf16.gmra.mxu0 %v2134
    %v2184 = vpop.f32.mrf.mxu0
    %v2185 = vadd.f32 0.0, %v2184
    %v2186 = vpop.f32.mrf.mxu0
    %v2187 = vpop.f32.mrf.mxu0
    %v2188 = vadd.f32 0.0, %v2187
    %v2189 = vpop.f32.mrf.mxu0
    %2190 = vmatprep.mubr.bf16.mxu0 0
    %2191 = vmatmul.mubr.bf16.gmra.mxu0 %v2135
    %v2192 = vpop.f32.mrf.mxu0
    %v2193 = vadd.f32 0.0, %v2192
    %v2194 = vpop.f32.mrf.mxu0
    %v2195 = vpop.f32.mrf.mxu0
    %v2196 = vadd.f32 0.0, %v2195
    %v2197 = vpop.f32.mrf.mxu0
    %2198 = vmatprep.mubr.bf16.mxu0 0
    %2199 = vmatmul.mubr.bf16.gmra.mxu0 %v2136
    %v2200 = vpop.f32.mrf.mxu0
    %v2201 = vadd.f32 0.0, %v2200
    %v2202 = vpop.f32.mrf.mxu0
    %v2203 = vpop.f32.mrf.mxu0
    %v2204 = vadd.f32 0.0, %v2203
    %v2205 = vpop.f32.mrf.mxu0
    %2206 = vmatprep.mubr.bf16.mxu0 0
    %2207 = vmatmul.mubr.bf16.gmra.mxu0 %v2137
    %v2208 = vpop.f32.mrf.mxu0
    %v2209 = vadd.f32 0.0, %v2208
    %v2210 = vpop.f32.mrf.mxu0
    %v2211 = vpop.f32.mrf.mxu0
    %v2212 = vadd.f32 0.0, %v2211
    %v2213 = vpop.f32.mrf.mxu0
    %2214 = vmatprep.mubr.bf16.mxu0 0
    %2215 = vmatmul.mubr.bf16.gmra.mxu0 %v2138
    %v2216 = vpop.f32.mrf.mxu0
    %v2217 = vadd.f32 0.0, %v2216
    %v2218 = vpop.f32.mrf.mxu0
    %v2219 = vpop.f32.mrf.mxu0
    %v2220 = vadd.f32 0.0, %v2219
    %v2221 = vpop.f32.mrf.mxu0
    %2222 = vmatprep.mubr.bf16.mxu0 0
    %2223 = vmatmul.mubr.bf16.gmra.mxu0 %v2139
    %v2224 = vpop.f32.mrf.mxu0
    %v2225 = vadd.f32 0.0, %v2224
    %v2226 = vpop.f32.mrf.mxu0
    %v2227 = vpop.f32.mrf.mxu0
    %v2228 = vadd.f32 0.0, %v2227
    %v2229 = vpop.f32.mrf.mxu0
    %2230 = vmatprep.mubr.bf16.mxu0 0
    %2231 = vmatmul.mubr.bf16.gmra.mxu0 %v2140
    %v2232 = vpop.f32.mrf.mxu0
    %v2233 = vadd.f32 0.0, %v2232
    %v2234 = vpop.f32.mrf.mxu0
    %v2235 = vpop.f32.mrf.mxu0
    %v2236 = vadd.f32 0.0, %v2235
    %v2237 = vpop.f32.mrf.mxu0
    %2238 = vmatprep.mubr.bf16.mxu0 0
    %2239 = vmatmul.mubr.bf16.gmra.mxu0 %v2141
    %v2240 = vpop.f32.mrf.mxu0
    %v2241 = vadd.f32 0.0, %v2240
    %v2242 = vpop.f32.mrf.mxu0
    %v2243 = vpop.f32.mrf.mxu0
    %v2244 = vadd.f32 0.0, %v2243
    %v2245 = vpop.f32.mrf.mxu0
    %2246 = vdwg.mxu0
    %vm2247 = vcmp.gt.f32.partialorder %v2185, 0.0
    %vm2248 = vcmp.gt.f32.partialorder %v2188, 0.0
    %vm2249 = vcmp.gt.f32.partialorder %v2193, 0.0
    %vm2250 = vcmp.gt.f32.partialorder %v2196, 0.0
    %vm2251 = vcmp.gt.f32.partialorder %v2201, 0.0
    %vm2252 = vcmp.gt.f32.partialorder %v2204, 0.0
    %vm2253 = vcmp.gt.f32.partialorder %v2209, 0.0
    %vm2254 = vcmp.gt.f32.partialorder %v2212, 0.0
    %vm2255 = vcmp.gt.f32.partialorder %v2217, 0.0
    %vm2256 = vcmp.gt.f32.partialorder %v2220, 0.0
    %vm2257 = vcmp.gt.f32.partialorder %v2225, 0.0
    %vm2258 = vcmp.gt.f32.partialorder %v2228, 0.0
    %vm2259 = vcmp.gt.f32.partialorder %v2233, 0.0
    %vm2260 = vcmp.gt.f32.partialorder %v2236, 0.0
    %vm2261 = vcmp.gt.f32.partialorder %v2241, 0.0
    %vm2262 = vcmp.gt.f32.partialorder %v2244, 0.0
    %v2263 = vmul.f32 %v2185, 1.442695
    %v2264 = vpow.pop %v2263
    %v2265 = vmul.f32 %v2188, 1.442695
    %v2266 = vpow.pop %v2265
    %v2267 = vmul.f32 %v2193, 1.442695
    %v2268 = vpow.pop %v2267
    %v2269 = vmul.f32 %v2196, 1.442695
    %v2270 = vpow.pop %v2269
    %v2271 = vmul.f32 %v2201, 1.442695
    %v2272 = vpow.pop %v2271
    %v2273 = vmul.f32 %v2204, 1.442695
    %v2274 = vpow.pop %v2273
    %v2275 = vmul.f32 %v2209, 1.442695
    %v2276 = vpow.pop %v2275
    %v2277 = vmul.f32 %v2212, 1.442695
    %v2278 = vpow.pop %v2277
    %v2279 = vmul.f32 %v2217, 1.442695
    %v2280 = vpow.pop %v2279
    %v2281 = vmul.f32 %v2220, 1.442695
    %v2282 = vpow.pop %v2281
    %v2283 = vmul.f32 %v2225, 1.442695
    %v2284 = vpow.pop %v2283
    %v2285 = vmul.f32 %v2228, 1.442695
    %v2286 = vpow.pop %v2285
    %v2287 = vmul.f32 %v2233, 1.442695
    %v2288 = vpow.pop %v2287
    %v2289 = vmul.f32 %v2236, 1.442695
    %v2290 = vpow.pop %v2289
    %v2291 = vmul.f32 %v2241, 1.442695
    %v2292 = vpow.pop %v2291
    %v2293 = vmul.f32 %v2244, 1.442695
    %v2294 = vpow.pop %v2293
    %v2295 = vsub.f32 %v2264, 1.0
    %v2296 = vsub.f32 %v2266, 1.0
    %v2297 = vsub.f32 %v2268, 1.0
    %v2298 = vsub.f32 %v2270, 1.0
    %v2299 = vsub.f32 %v2272, 1.0
    %v2300 = vsub.f32 %v2274, 1.0
    %v2301 = vsub.f32 %v2276, 1.0
    %v2302 = vsub.f32 %v2278, 1.0
    %v2303 = vsub.f32 %v2280, 1.0
    %v2304 = vsub.f32 %v2282, 1.0
    %v2305 = vsub.f32 %v2284, 1.0
    %v2306 = vsub.f32 %v2286, 1.0
    %v2307 = vsub.f32 %v2288, 1.0
    %v2308 = vsub.f32 %v2290, 1.0
    %v2309 = vsub.f32 %v2292, 1.0
    %v2310 = vsub.f32 %v2294, 1.0
    %v2311 = vsel %vm2247, %v2185, %v2295
    %v2312 = vsel %vm2248, %v2188, %v2296
    %v2313 = vsel %vm2249, %v2193, %v2297
    %v2314 = vsel %vm2250, %v2196, %v2298
    %v2315 = vsel %vm2251, %v2201, %v2299
    %v2316 = vsel %vm2252, %v2204, %v2300
    %v2317 = vsel %vm2253, %v2209, %v2301
    %v2318 = vsel %vm2254, %v2212, %v2302
    %v2319 = vsel %vm2255, %v2217, %v2303
    %v2320 = vsel %vm2256, %v2220, %v2304
    %v2321 = vsel %vm2257, %v2225, %v2305
    %v2322 = vsel %vm2258, %v2228, %v2306
    %v2323 = vsel %vm2259, %v2233, %v2307
    %v2324 = vsel %vm2260, %v2236, %v2308
    %v2325 = vsel %vm2261, %v2241, %v2309
    %v2326 = vsel %vm2262, %v2244, %v2310
    %v2327 = vmul.f32 %v2311, 0.999995
    %v2328 = vmul.f32 %v2312, 0.999995
    %v2329 = vmul.f32 %v2313, 0.999995
    %v2330 = vmul.f32 %v2314, 0.999995
    %v2331 = vmul.f32 %v2315, 0.999995
    %v2332 = vmul.f32 %v2316, 0.999995
    %v2333 = vmul.f32 %v2317, 0.999995
    %v2334 = vmul.f32 %v2318, 0.999995
    %v2335 = vmul.f32 %v2319, 0.999995
    %v2336 = vmul.f32 %v2320, 0.999995
    %v2337 = vmul.f32 %v2321, 0.999995
    %v2338 = vmul.f32 %v2322, 0.999995
    %v2339 = vmul.f32 %v2323, 0.999995
    %v2340 = vmul.f32 %v2324, 0.999995
    %v2341 = vmul.f32 %v2325, 0.999995
    %v2342 = vmul.f32 %v2326, 0.999995
    %v2343 = vmul.f32 %v2327, 0.01
    %v2344 = vmul.f32 %v2328, 0.01
    %v2345 = vmul.f32 %v2329, 0.01
    %v2346 = vmul.f32 %v2330, 0.01
    %v2347 = vmul.f32 %v2331, 0.01
    %v2348 = vmul.f32 %v2332, 0.01
    %v2349 = vmul.f32 %v2333, 0.01
    %v2350 = vmul.f32 %v2334, 0.01
    %v2351 = vmul.f32 %v2335, 0.01
    %v2352 = vmul.f32 %v2336, 0.01
    %v2353 = vmul.f32 %v2337, 0.01
    %v2354 = vmul.f32 %v2338, 0.01
    %v2355 = vmul.f32 %v2339, 0.01
    %v2356 = vmul.f32 %v2340, 0.01
    %v2357 = vmul.f32 %v2341, 0.01
    %v2358 = vmul.f32 %v2342, 0.01
    %v2359 = vmax.f32 %v2327, %v2343
    %v2360 = vmax.f32 %v2328, %v2344
    %v2361 = vmax.f32 %v2329, %v2345
    %v2362 = vmax.f32 %v2330, %v2346
    %v2363 = vmax.f32 %v2331, %v2347
    %v2364 = vmax.f32 %v2332, %v2348
    %v2365 = vmax.f32 %v2333, %v2349
    %v2366 = vmax.f32 %v2334, %v2350
    %v2367 = vmax.f32 %v2335, %v2351
    %v2368 = vmax.f32 %v2336, %v2352
    %v2369 = vmax.f32 %v2337, %v2353
    %v2370 = vmax.f32 %v2338, %v2354
    %v2371 = vmax.f32 %v2339, %v2355
    %v2372 = vmax.f32 %v2340, %v2356
    %v2373 = vmax.f32 %v2341, %v2357
    %v2374 = vmax.f32 %v2342, %v2358
    %v2375 = vpack.c.bf16 %v2360, %v2359
    %v2376 = vpack.c.bf16 %v2362, %v2361
    %v2377 = vpack.c.bf16 %v2364, %v2363
    %v2378 = vpack.c.bf16 %v2366, %v2365
    %v2379 = vpack.c.bf16 %v2368, %v2367
    %v2380 = vpack.c.bf16 %v2370, %v2369
    %v2381 = vpack.c.bf16 %v2372, %v2371
    %v2382 = vpack.c.bf16 %v2374, %v2373
    %v2383 = vld [vmem:[%s8] sm:$0xf]
    %v2384 = vld [vmem:[%s8 + $0x4] sm:$0xf]
    %v2385 = vld [vmem:[%s8 + $0x8] sm:$0xf]
    %v2386 = vld [vmem:[%s8 + $0xc] sm:$0xf]
    %v2387 = vld [vmem:[%s8 + $0x10] sm:$0xf]
    %v2388 = vld [vmem:[%s8 + $0x14] sm:$0xf]
    %v2389 = vld [vmem:[%s8 + $0x18] sm:$0xf]
    %v2390 = vld [vmem:[%s8 + $0x1c] sm:$0xf]
    %v2391 = vld [vmem:[%s8 + $0x20] sm:$0xf]
    %v2392 = vld [vmem:[%s8 + $0x24] sm:$0xf]
    %v2393 = vld [vmem:[%s8 + $0x28] sm:$0xf]
    %v2394 = vld [vmem:[%s8 + $0x2c] sm:$0xf]
    %v2395 = vld [vmem:[%s8 + $0x30] sm:$0xf]
    %v2396 = vld [vmem:[%s8 + $0x34] sm:$0xf]
    %v2397 = vld [vmem:[%s8 + $0x38] sm:$0xf]
    %v2398 = vld [vmem:[%s8 + $0x3c] sm:$0xf]
    %2399 = vxpose.xlu0.c.b16.start [1/8] %v2375, 128
    %2400 = vxpose.xlu0.c.b16.cont [2/8] %v2376, 128
    %2401 = vxpose.xlu0.c.b16.cont [3/8] %v2377, 128
    %2402 = vxpose.xlu0.c.b16.cont [4/8] %v2378, 128
    %2403 = vxpose.xlu0.c.b16.cont [5/8] %v2379, 128
    %2404 = vxpose.xlu0.c.b16.cont [6/8] %v2380, 128
    %2405 = vxpose.xlu0.c.b16.cont [7/8] %v2381, 128
    %2406 = vxpose.xlu0.c.b16.end [8/8] %v2382, 128
    %v2407 = vpop.trf.xlu0
    %v2408 = vpop.trf.xlu0
    %v2409 = vpop.trf.xlu0
    %v2410 = vpop.trf.xlu0
    %v2411 = vpop.trf.xlu0
    %v2412 = vpop.trf.xlu0
    %v2413 = vpop.trf.xlu0
    %v2414 = vpop.trf.xlu0
    %v2431 = vunpack.c.l.b16 %v2383
    %v2432 = vunpack.c.l.b16 %v2384
    %v2433 = vunpack.c.l.b16 %v2385
    %v2434 = vunpack.c.l.b16 %v2386
    %v2435 = vunpack.c.l.b16 %v2387
    %v2436 = vunpack.c.l.b16 %v2388
    %v2437 = vunpack.c.l.b16 %v2389
    %v2438 = vunpack.c.l.b16 %v2390
    %v2439 = vunpack.c.l.b16 %v2391
    %v2440 = vunpack.c.l.b16 %v2392
    %v2441 = vunpack.c.l.b16 %v2393
    %v2442 = vunpack.c.l.b16 %v2394
    %v2443 = vunpack.c.l.b16 %v2395
    %v2444 = vunpack.c.l.b16 %v2396
    %v2445 = vunpack.c.l.b16 %v2397
    %v2446 = vunpack.c.l.b16 %v2398
    %v2447 = vpack.c.b16 %v2432, %v2431
    %v2448 = vpack.c.b16 %v2434, %v2433
    %v2449 = vpack.c.b16 %v2436, %v2435
    %v2450 = vpack.c.b16 %v2438, %v2437
    %v2451 = vpack.c.b16 %v2440, %v2439
    %v2452 = vpack.c.b16 %v2442, %v2441
    %v2453 = vpack.c.b16 %v2444, %v2443
    %v2454 = vpack.c.b16 %v2446, %v2445
    %2463 = vmatprep.subr.bf16.mxu0 0
    %2464 = vmatpush1.bf16.xpose.msra.mxu0 %v2454
    %2465 = vmatprep.subr.bf16.mxu0 0
    %2466 = vmatpush1.bf16.xpose.msra.mxu0 %v2453
    %2467 = vmatprep.subr.bf16.mxu0 0
    %2468 = vmatpush1.bf16.xpose.msra.mxu0 %v2452
    %2469 = vmatprep.subr.bf16.mxu0 0
    %2470 = vmatpush1.bf16.xpose.msra.mxu0 %v2451
    %2471 = vmatprep.subr.bf16.mxu0 0
    %2472 = vmatpush1.bf16.xpose.msra.mxu0 %v2450
    %2473 = vmatprep.subr.bf16.mxu0 0
    %2474 = vmatpush1.bf16.xpose.msra.mxu0 %v2449
    %2475 = vmatprep.subr.bf16.mxu0 0
    %2476 = vmatpush1.bf16.xpose.msra.mxu0 %v2448
    %2477 = vmatprep.subr.bf16.mxu0 0
    %2478 = vmatpush1.bf16.xpose.msra.mxu0 %v2447
    %2479 = vmatprep.subr.bf16.mxu0 0
    %2480 = vmatpush2.bf16.xpose.msra.mxu0 0
    %2481 = vmatprep.subr.bf16.mxu0 0
    %2482 = vmatpush2.bf16.xpose.msra.mxu0 0
    %2483 = vmatprep.subr.bf16.mxu0 0
    %2484 = vmatpush2.bf16.xpose.msra.mxu0 0
    %2485 = vmatprep.subr.bf16.mxu0 0
    %2486 = vmatpush2.bf16.xpose.msra.mxu0 0
    %2487 = vmatprep.subr.bf16.mxu0 0
    %2488 = vmatpush2.bf16.xpose.msra.mxu0 0
    %2489 = vmatprep.subr.bf16.mxu0 0
    %2490 = vmatpush2.bf16.xpose.msra.mxu0 0
    %2491 = vmatprep.subr.bf16.mxu0 0
    %2492 = vmatpush2.bf16.xpose.msra.mxu0 0
    %2493 = vmatprep.subr.bf16.mxu0 0
    %2494 = vmatpush2.bf16.xpose.msra.mxu0 0
    %2495 = vmatprep.mubr.bf16.mxu0 0
    %2496 = vmatmul.mubr.bf16.gmra.mxu0 %v2407
    %v2497 = vpop.f32.mrf.mxu0
    %v2498 = vadd.f32 0.0, %v2497
    %v2499 = vpop.f32.mrf.mxu0
    %v2500 = vpop.f32.mrf.mxu0
    %v2501 = vadd.f32 0.0, %v2500
    %v2502 = vpop.f32.mrf.mxu0
    %2503 = vdwg.mxu0
    %2504 = vst [vmem:[#allocation2] sm:$0xff] %v2498
    %2505 = vst [vmem:[#allocation2 + $0x8] sm:$0xff] %v2501
    // Predicated region
    $region38: #{gat_forward.1} parent=1 // pred_check
      _
    $region39: #{gat_forward.1} parent=1 // pred_check_branch
      %2507 = sbr.rel (0) target = $region41
    $region40: #{gat_forward.1} parent=1 // pred_region
      %s2509 = ssub.s32 256, 256
      %2510 = vsyncadd [#allocation3], %s2509
      %s2511 = sshll.u32 [#allocation2], 4
      %s2512 = int_to_ptr.vmem [resolvable:$true] %s2511
      %2517 = dma.vmem_to_hbm [thread:$0]  %s2512, 256, %s9, [#allocation3], 128, 128, 8
    $region41: #{gat_forward.1} parent=1 // pred_fallthru
      _
    // Predicated region
    $region42: #{gat_forward.1} parent=1 // pred_check
      _
    $region43: #{gat_forward.1} parent=1 // pred_check_branch
      %2519 = sbr.rel (0) target = $region45
    $region44: #{gat_forward.1} parent=1 // pred_region
      %2520 = dma.done [#allocation3], 256
    $region45: #{gat_forward.1} parent=1 // pred_fallthru
      _
    %2521 = vsyncpa [#allocation3], 1

</llo_original>
